<compile_context>
chip_gen: v5e
topology: v5e:2x2
jax: 0.10.0
libtpu: 0.0.40
codegen_flags: <defaults>
</compile_context>

<pallas_src>
import jax
import jax.numpy as jnp
from jax.experimental import pallas as pl
from jax.experimental.pallas import tpu as pltpu

HIDDEN_SIZE = 500
IMG_SIZE = 28                          # preprocess = False in the reference
INPUT_SIZE = 1 * IMG_SIZE * IMG_SIZE   # 784

LANE = 128
SUBLANE = 8                            # f32 sublane packing (x and out tiles are f32)
HIDDEN_PAD = 512                       # round_up(500, 128) -> lane-dense fc output
TM_MAX = 512                           # batch tile cap (~9 MiB VMEM, fits v7x easily)


def _round_up(n, m):
    return (n + m - 1) // m * m


def _choose_tm(batch):
    """Batch tile: large enough to amortize the ~0.35 us per-step pipeline
    overhead, while guaranteeing >=2 grid steps whenever the batch allows it
    (so the "parallel" batch axis shards across v7x's two TensorCores)."""
    if batch <= TM_MAX:
        if batch > TM_MAX // 2:
            # 256 < B <= 512: split into two steps for megacore sharding.
            return _round_up((batch + 1) // 2, SUBLANE)
        return _round_up(batch, SUBLANE)
    return TM_MAX


def mlp_kernel(x_ref, w1_ref, b1_ref, w2_ref, b2_ref, o_ref):
    # fc1: cast the f32 activation tile to bf16 in-kernel (VPU work hidden
    # under MXU slack) — the wrapper never re-materializes x.
    x = x_ref[...].astype(jnp.bfloat16)
    h = jnp.dot(x, w1_ref[...], preferred_element_type=jnp.float32)
    h = jnp.maximum(h + b1_ref[...], 0.0)
    # fc2: bf16 operands, f32 accumulation, f32 bias add.
    out = jnp.dot(h.astype(jnp.bfloat16), w2_ref[...],
                  preferred_element_type=jnp.float32)
    o_ref[...] = (out + b2_ref[...]).astype(o_ref.dtype)


@jax.jit
def neural_net_forward_padded(x, w1p, b1p, w2p, b2p):
    """Perf path.  x: (B, 784) f32; w1p: (784, 512) bf16; b1p: (1, 512) f32;
    w2p: (512, 512) bf16; b2p: (1, 512) f32.  Returns (B, 512) f32 whose first
    500 columns are the fc2 output (lane-dense layout for downstream ops;
    columns 500..511 are exactly zero)."""
    B = x.shape[0]
    tm = _choose_tm(B)
    grid = (pl.cdiv(B, tm),)

    flops = 2 * B * (INPUT_SIZE * HIDDEN_SIZE + HIDDEN_SIZE * HIDDEN_SIZE)
    bytes_accessed = (x.size * 4 + w1p.size * 2 + w2p.size * 2
                      + b1p.size * 4 + b2p.size * 4 + B * HIDDEN_PAD * 4)

    return pl.pallas_call(
        mlp_kernel,
        out_shape=jax.ShapeDtypeStruct((B, HIDDEN_PAD), jnp.float32),
        grid=grid,
        in_specs=[
            # x tile: f32, full 784 last dim (== array dim), batch-tiled rows.
            pl.BlockSpec((tm, INPUT_SIZE), lambda i: (i, 0)),
            # Weights / biases: constant block index -> VMEM-resident.
            pl.BlockSpec((INPUT_SIZE, HIDDEN_PAD), lambda i: (0, 0)),
            pl.BlockSpec((1, HIDDEN_PAD), lambda i: (0, 0)),
            pl.BlockSpec((HIDDEN_PAD, HIDDEN_PAD), lambda i: (0, 0)),
            pl.BlockSpec((1, HIDDEN_PAD), lambda i: (0, 0)),
        ],
        out_specs=pl.BlockSpec((tm, HIDDEN_PAD), lambda i: (i, 0)),
        compiler_params=pltpu.CompilerParams(
            dimension_semantics=("parallel",)),
        cost_estimate=pl.CostEstimate(
            flops=flops, transcendentals=0, bytes_accessed=bytes_accessed),
    )(x, w1p, b1p, w2p, b2p)


def neural_net_forward(x, params):
    """PyTorch-equivalent API: returns (B, 500).  Note the column slice costs
    one extra XLA copy pass — perf-sensitive consumers should take the padded
    (B, 512) output from neural_net_forward_padded directly."""
    w1p, b1p, w2p, b2p = params
    return neural_net_forward_padded(x, w1p, b1p, w2p, b2p)[:, :HIDDEN_SIZE]


def prepare_params(w1, b1, w2, b2):
    """One-time weight prep (call OUTSIDE the per-step forward): pad the
    hidden dim 500 -> 512 lanes and cast matmul weights to bf16.  Zero pad
    rows/columns contribute nothing to the dots, so results are unchanged."""
    w1p = jnp.zeros((INPUT_SIZE, HIDDEN_PAD), jnp.bfloat16)
    w1p = w1p.at[:, :HIDDEN_SIZE].set(w1.astype(jnp.bfloat16))
    b1p = jnp.zeros((1, HIDDEN_PAD), jnp.float32).at[:, :HIDDEN_SIZE].set(b1)
    w2p = jnp.zeros((HIDDEN_PAD, HIDDEN_PAD), jnp.bfloat16)
    w2p = w2p.at[:HIDDEN_SIZE, :HIDDEN_SIZE].set(w2.astype(jnp.bfloat16))
    b2p = jnp.zeros((1, HIDDEN_PAD), jnp.float32).at[:, :HIDDEN_SIZE].set(b2)
    return w1p, b1p, w2p, b2p


def init_params(key, input_size, hidden_size):
    """Deterministic PyTorch-Linear-style init (uniform +/- 1/sqrt(fan_in))."""
    k1, k2, k3, k4 = jax.random.split(key, 4)
    bound1 = 1.0 / jnp.sqrt(jnp.float32(input_size))
    bound2 = 1.0 / jnp.sqrt(jnp.float32(hidden_size))
    # Stored as (in, out): transpose of PyTorch's (out, in) weight layout.
    w1 = jax.random.uniform(k1, (input_size, hidden_size), jnp.float32,
                            -bound1, bound1)
    b1 = jax.random.uniform(k2, (1, hidden_size), jnp.float32, -bound1, bound1)
    w2 = jax.random.uniform(k3, (hidden_size, hidden_size), jnp.float32,
                            -bound2, bound2)
    b2 = jax.random.uniform(k4, (1, hidden_size), jnp.float32, -bound2, bound2)
    return w1, b1, w2, b2


if __name__ == "__main__":
    key = jax.random.PRNGKey(0)
    kx, kp = jax.random.split(key)

    B = 8
    x = jax.random.normal(kx, (B, INPUT_SIZE), dtype=jnp.float32)
    w1, b1, w2, b2 = init_params(kp, INPUT_SIZE, HIDDEN_SIZE)

    # One-time weight prep (padding + bf16 cast) outside the forward.
    params = prepare_params(w1, b1, w2, b2)

    out_padded = neural_net_forward_padded(x, *params)      # (B, 512) perf path
    out_padded = jax.block_until_ready(out_padded)
    out = out_padded[:, :HIDDEN_SIZE]                        # PyTorch-equivalent view
    assert out.shape == (B, HIDDEN_SIZE)

    # Padded output columns must be exactly zero (zero weight/bias pad).
    assert jnp.all(out_padded[:, HIDDEN_SIZE:] == 0.0)

    # Reference with matched bf16 rounding of the matmul operands (the kernel
    # uses bf16 inputs/weights with f32 accumulation) — should agree closely.
    xb = x.astype(jnp.bfloat16).astype(jnp.float32)
    w1b = w1.astype(jnp.bfloat16).astype(jnp.float32)
    w2b = w2.astype(jnp.bfloat16).astype(jnp.float32)
    h = jnp.maximum(xb @ w1b + b1, 0.0)
    ref_bf16 = h.astype(jnp.bfloat16).astype(jnp.float32) @ w2b + b2
    assert jnp.allclose(out, ref_bf16, atol=2e-3, rtol=2e-3)

    # Loose sanity check against the pure-f32 PyTorch-equivalent forward.
    # bf16 matmul operands are a deliberate precision tradeoff (inference-OK).
    ref_f32 = jnp.maximum(x @ w1 + b1, 0.0) @ w2 + b2
    assert jnp.allclose(out, ref_f32, atol=5e-2, rtol=5e-2)

    print("KERNEL_OK")
</pallas_src>

<mosaic_0001>
module attributes {stable_mosaic.version = 11 : i64} {
  func.func @mlp_kernel(%arg0: i32, %arg1: memref<8x784xf32, #tpu.memory_space<vmem>>, %arg2: memref<784x512xbf16, #tpu.memory_space<vmem>>, %arg3: memref<1x512xf32, #tpu.memory_space<vmem>>, %arg4: memref<512x512xbf16, #tpu.memory_space<vmem>>, %arg5: memref<1x512xf32, #tpu.memory_space<vmem>>, %arg6: memref<8x512xf32, #tpu.memory_space<vmem>>) attributes {dimension_semantics = [#tpu.dimension_semantics<parallel>], iteration_bounds = array<i64: 1>, scalar_prefetch = 0 : i64, scratch_operands = 0 : i64, tpu.core_type = #tpu.core_type<tc>, window_params = [{transform_indices = @transform_0, window_bounds = array<i64: 8, 784>}, {pipeline_mode = #tpu.pipeline_mode<synchronous>, transform_indices = @transform_1, window_bounds = array<i64: 784, 512>}, {pipeline_mode = #tpu.pipeline_mode<synchronous>, transform_indices = @transform_2, window_bounds = array<i64: 1, 512>}, {pipeline_mode = #tpu.pipeline_mode<synchronous>, transform_indices = @transform_3, window_bounds = array<i64: 512, 512>}, {pipeline_mode = #tpu.pipeline_mode<synchronous>, transform_indices = @transform_4, window_bounds = array<i64: 1, 512>}, {transform_indices = @transform_5, window_bounds = array<i64: 8, 512>}]} {
    %c0 = arith.constant 0 : index
    %c0_0 = arith.constant 0 : index
    %0 = vector.load %arg1[%c0, %c0_0] : memref<8x784xf32, #tpu.memory_space<vmem>>, vector<8x784xf32>
    %1 = arith.truncf %0 : vector<8x784xf32> to vector<8x784xbf16>
    %c0_1 = arith.constant 0 : index
    %c0_2 = arith.constant 0 : index
    %2 = vector.load %arg2[%c0_1, %c0_2] : memref<784x512xbf16, #tpu.memory_space<vmem>>, vector<784x512xbf16>
    %cst = arith.constant dense<0.000000e+00> : vector<8x512xf32>
    %3 = tpu.matmul %1, %2, %cst {dimension_numbers = #tpu.dot_dimension_numbers<[1], [0], [0], [1], [0, 0, 1, 1], [], []>} : vector<8x784xbf16>, vector<784x512xbf16>, vector<8x512xf32> -> vector<8x512xf32>
    %c0_3 = arith.constant 0 : index
    %c0_4 = arith.constant 0 : index
    %4 = vector.load %arg3[%c0_3, %c0_4] : memref<1x512xf32, #tpu.memory_space<vmem>>, vector<1x512xf32>
    %5 = vector.broadcast %4 : vector<1x512xf32> to vector<8x512xf32>
    %6 = arith.addf %3, %5 : vector<8x512xf32>
    %cst_5 = arith.constant 0.000000e+00 : f32
    %7 = vector.broadcast %cst_5 : f32 to vector<8x512xf32>
    %8 = arith.maximumf %6, %7 : vector<8x512xf32>
    %9 = arith.truncf %8 : vector<8x512xf32> to vector<8x512xbf16>
    %c0_6 = arith.constant 0 : index
    %c0_7 = arith.constant 0 : index
    %10 = vector.load %arg4[%c0_6, %c0_7] : memref<512x512xbf16, #tpu.memory_space<vmem>>, vector<512x512xbf16>
    %cst_8 = arith.constant dense<0.000000e+00> : vector<8x512xf32>
    %11 = tpu.matmul %9, %10, %cst_8 {dimension_numbers = #tpu.dot_dimension_numbers<[1], [0], [0], [1], [0, 0, 1, 1], [], []>} : vector<8x512xbf16>, vector<512x512xbf16>, vector<8x512xf32> -> vector<8x512xf32>
    %c0_9 = arith.constant 0 : index
    %c0_10 = arith.constant 0 : index
    %12 = vector.load %arg5[%c0_9, %c0_10] : memref<1x512xf32, #tpu.memory_space<vmem>>, vector<1x512xf32>
    %13 = vector.broadcast %12 : vector<1x512xf32> to vector<8x512xf32>
    %14 = arith.addf %11, %13 : vector<8x512xf32>
    %c0_11 = arith.constant 0 : index
    %c0_12 = arith.constant 0 : index
    %15 = vector.load %arg6[%c0_11, %c0_12] : memref<8x512xf32, #tpu.memory_space<vmem>>, vector<8x512xf32>
    tpu.vector_store %arg6[%c0_11, %c0_12], %14 {strides = array<i32>} : memref<8x512xf32, #tpu.memory_space<vmem>>, vector<8x512xf32>,
    return
  }
  func.func @transform_0(%arg0: i32) -> (i32, i32) {
    %c0_i32 = arith.constant 0 : i32
    %c0_i32_0 = arith.constant 0 : i32
    return %arg0, %c0_i32 : i32, i32
  }
  func.func @transform_1(%arg0: i32) -> (i32, i32) {
    %c0_i32 = arith.constant 0 : i32
    %c0_i32_0 = arith.constant 0 : i32
    %c0_i32_1 = arith.constant 0 : i32
    return %c0_i32, %c0_i32_0 : i32, i32
  }
  func.func @transform_2(%arg0: i32) -> (i32, i32) {
    %c0_i32 = arith.constant 0 : i32
    %c0_i32_0 = arith.constant 0 : i32
    %c0_i32_1 = arith.constant 0 : i32
    return %c0_i32, %c0_i32_0 : i32, i32
  }
  func.func @transform_3(%arg0: i32) -> (i32, i32) {
    %c0_i32 = arith.constant 0 : i32
    %c0_i32_0 = arith.constant 0 : i32
    %c0_i32_1 = arith.constant 0 : i32
    return %c0_i32, %c0_i32_0 : i32, i32
  }
  func.func @transform_4(%arg0: i32) -> (i32, i32) {
    %c0_i32 = arith.constant 0 : i32
    %c0_i32_0 = arith.constant 0 : i32
    %c0_i32_1 = arith.constant 0 : i32
    return %c0_i32, %c0_i32_0 : i32, i32
  }
  func.func @transform_5(%arg0: i32) -> (i32, i32) {
    %c0_i32 = arith.constant 0 : i32
    %c0_i32_0 = arith.constant 0 : i32
    return %arg0, %c0_i32 : i32, i32
  }
}

</mosaic_0001>

<llo_original>
// kernel: neural_net_forward_padded.1
$region0: #{neural_net_forward_padded.1}
  #allocation0 [shape = 'u32[]', space=smem, size = 0x4, offset = 0x4, fixed_abs, tag = 'smem constant byte address 0x4 - core index']
  #allocation1 [shape = 'u32[72,128]{1,0:T(1,128)}', space=vmem, size = 0x9000, scoped, tag = 'internal scratch']
  %s0 = inlined_call_operand.hbm [shape: f32[8,784], index: 0, kind: input, shape index: {}]
  %s1 = inlined_call_operand.hbm [shape: bf16[784,512], index: 1, kind: input, shape index: {}]
  %s2 = inlined_call_operand.hbm [shape: f32[1,512], index: 2, kind: input, shape index: {}]
  %s3 = inlined_call_operand.hbm [shape: bf16[512,512], index: 3, kind: input, shape index: {}]
  %s4 = inlined_call_operand.hbm [shape: f32[1,512], index: 4, kind: input, shape index: {}]
  %s5 = inlined_call_operand.hbm [shape: f32[8,512], index: 5, kind: output, shape index: {}]
  %s6 = sld [smem:[#allocation0]]
  $region50: #{neural_net_forward_padded.1} parent=0
    _
  %s8 = ssub.s32 1, %s6
  %s9 = scalar_select 0, %s8, %s6
  $region1: #{neural_net_forward_padded.1} parent=0
    #allocation2 [shape = 'u8[28672]{0}', space=vmem, size = 0x7000, scoped, tag = 'input window, operand 0, single buffered']
    #allocation3 [shape = 's32[1]{0}', space=sflag, size = 0x4, scoped, tag = 'scoped memory for neural_net_forward_padded.1']
    #allocation4 [shape = 's32[1]{0}', space=sflag, size = 0x4, scoped, tag = 'scoped memory for neural_net_forward_padded.1']
    #allocation5 [shape = 'u8[802816]{0}', space=vmem, size = 0xc4000, scoped, tag = 'input window, operand 1, single buffered']
    #allocation6 [shape = 's32[1]{0}', space=sflag, size = 0x4, scoped, tag = 'scoped memory for neural_net_forward_padded.1']
    #allocation7 [shape = 'u8[2048]{0}', space=vmem, size = 0x800, scoped, tag = 'input window, operand 2, single buffered']
    #allocation8 [shape = 'u8[524288]{0}', space=vmem, size = 0x80000, scoped, tag = 'input window, operand 3, single buffered']
    #allocation9 [shape = 's32[1]{0}', space=sflag, size = 0x4, scoped, tag = 'scoped memory for neural_net_forward_padded.1']
    #allocation10 [shape = 'u8[2048]{0}', space=vmem, size = 0x800, scoped, tag = 'input window, operand 4, single buffered']
    #allocation11 [shape = 'u8[16384]{0}', space=vmem, size = 0x4000, scoped, tag = 'output window, operand 0, single buffered']
    %10 = vsyncpa [#allocation3], 0
    %11 = vsyncpa [#allocation6], 0
    %12 = vsyncpa [#allocation9], 0
    %13 = vsyncpa [#allocation4], 0
    // Predicated region
    $region2: #{neural_net_forward_padded.1} parent=1 // pred_check
      _
    $region3: #{neural_net_forward_padded.1} parent=1 // pred_check_branch
      %15 = sbr.rel (0) target = $region5
    $region4: #{neural_net_forward_padded.1} parent=1 // pred_region
      %17 = vsyncadd [#allocation3], 0
      %s19 = sshll.u32 %s0, 4
      %s20 = int_to_ptr.hbm [resolvable:$true] %s19
      %s21 = sshll.u32 [#allocation2], 4
      %s22 = int_to_ptr.vmem [resolvable:$true] %s21
      %24 = dma.hbm_to_vmem [thread:$0]  %s20, 896, %s22, [#allocation3]
    $region5: #{neural_net_forward_padded.1} parent=1 // pred_fallthru
      _
    // Predicated region
    $region6: #{neural_net_forward_padded.1} parent=1 // pred_check
      _
    $region7: #{neural_net_forward_padded.1} parent=1 // pred_check_branch
      %26 = sbr.rel (0) target = $region9
    $region8: #{neural_net_forward_padded.1} parent=1 // pred_region
      %28 = vsyncadd [#allocation6], 0
      %s29 = sshll.u32 %s1, 4
      %s30 = int_to_ptr.hbm [resolvable:$true] %s29
      %s31 = sshll.u32 [#allocation5], 4
      %s32 = int_to_ptr.vmem [resolvable:$true] %s31
      %37 = dma.hbm_to_vmem [thread:$0]  %s30, 25088, %s32, [#allocation6], 256, 256, 16
    $region9: #{neural_net_forward_padded.1} parent=1 // pred_fallthru
      _
    // Predicated region
    $region10: #{neural_net_forward_padded.1} parent=1 // pred_check
      _
    $region11: #{neural_net_forward_padded.1} parent=1 // pred_check_branch
      %39 = sbr.rel (0) target = $region13
    $region12: #{neural_net_forward_padded.1} parent=1 // pred_region
      %41 = vsyncadd [#allocation6], 0
      %s43 = sshll.u32 %s2, 4
      %s44 = int_to_ptr.hbm [resolvable:$true] %s43
      %s45 = sshll.u32 [#allocation7], 4
      %s46 = int_to_ptr.vmem [resolvable:$true] %s45
      %48 = dma.hbm_to_vmem [thread:$0]  %s44, 64, %s46, [#allocation6]
    $region13: #{neural_net_forward_padded.1} parent=1 // pred_fallthru
      _
    // Predicated region
    $region14: #{neural_net_forward_padded.1} parent=1 // pred_check
      _
    $region15: #{neural_net_forward_padded.1} parent=1 // pred_check_branch
      %50 = sbr.rel (0) target = $region17
    $region16: #{neural_net_forward_padded.1} parent=1 // pred_region
      %52 = vsyncadd [#allocation9], 0
      %s53 = sshll.u32 %s3, 4
      %s54 = int_to_ptr.hbm [resolvable:$true] %s53
      %s55 = sshll.u32 [#allocation8], 4
      %s56 = int_to_ptr.vmem [resolvable:$true] %s55
      %61 = dma.hbm_to_vmem [thread:$0]  %s54, 16384, %s56, [#allocation9], 256, 256, 16
    $region17: #{neural_net_forward_padded.1} parent=1 // pred_fallthru
      _
    // Predicated region
    $region18: #{neural_net_forward_padded.1} parent=1 // pred_check
      _
    $region19: #{neural_net_forward_padded.1} parent=1 // pred_check_branch
      %63 = sbr.rel (0) target = $region21
    $region20: #{neural_net_forward_padded.1} parent=1 // pred_region
      %65 = vsyncadd [#allocation9], 0
      %s67 = sshll.u32 %s4, 4
      %s68 = int_to_ptr.hbm [resolvable:$true] %s67
      %s69 = sshll.u32 [#allocation10], 4
      %s70 = int_to_ptr.vmem [resolvable:$true] %s69
      %72 = dma.hbm_to_vmem [thread:$0]  %s68, 64, %s70, [#allocation9]
    $region21: #{neural_net_forward_padded.1} parent=1 // pred_fallthru
      _
    // Predicated region
    $region22: #{neural_net_forward_padded.1} parent=1 // pred_check
      _
    $region23: #{neural_net_forward_padded.1} parent=1 // pred_check_branch
      %74 = sbr.rel (0) target = $region25
    $region24: #{neural_net_forward_padded.1} parent=1 // pred_region
      %76 = dma.done [#allocation3], 896
    $region25: #{neural_net_forward_padded.1} parent=1 // pred_fallthru
      _
    // Predicated region
    $region26: #{neural_net_forward_padded.1} parent=1 // pred_check
      _
    $region27: #{neural_net_forward_padded.1} parent=1 // pred_check_branch
      %78 = sbr.rel (0) target = $region29
    $region28: #{neural_net_forward_padded.1} parent=1 // pred_region
      %80 = dma.done [#allocation6], 25088
    $region29: #{neural_net_forward_padded.1} parent=1 // pred_fallthru
      _
    // Predicated region
    $region30: #{neural_net_forward_padded.1} parent=1 // pred_check
      _
    $region31: #{neural_net_forward_padded.1} parent=1 // pred_check_branch
      %82 = sbr.rel (0) target = $region33
    $region32: #{neural_net_forward_padded.1} parent=1 // pred_region
      %84 = dma.done [#allocation6], 64
    $region33: #{neural_net_forward_padded.1} parent=1 // pred_fallthru
      _
    // Predicated region
    $region34: #{neural_net_forward_padded.1} parent=1 // pred_check
      _
    $region35: #{neural_net_forward_padded.1} parent=1 // pred_check_branch
      %86 = sbr.rel (0) target = $region37
    $region36: #{neural_net_forward_padded.1} parent=1 // pred_region
      %88 = dma.done [#allocation9], 16384
    $region37: #{neural_net_forward_padded.1} parent=1 // pred_fallthru
      _
    // Predicated region
    $region38: #{neural_net_forward_padded.1} parent=1 // pred_check
      _
    $region39: #{neural_net_forward_padded.1} parent=1 // pred_check_branch
      %90 = sbr.rel (0) target = $region41
    $region40: #{neural_net_forward_padded.1} parent=1 // pred_region
      %92 = dma.done [#allocation9], 64
    $region41: #{neural_net_forward_padded.1} parent=1 // pred_fallthru
      _
    %v94 = vld [vmem:[#allocation2] sm:$0xff]
    %v95 = vld [vmem:[#allocation2 + $0x8] sm:$0xff]
    %v96 = vld [vmem:[#allocation2 + $0x10] sm:$0xff]
    %v97 = vld [vmem:[#allocation2 + $0x18] sm:$0xff]
    %v98 = vld [vmem:[#allocation2 + $0x20] sm:$0xff]
    %v99 = vld [vmem:[#allocation2 + $0x28] sm:$0xff]
    %v100 = vld [vmem:[#allocation2 + $0x30] sm:$0xff]
    %v101 = vpack.c.bf16 %v94, %v94
    %v102 = vpack.c.bf16 %v95, %v95
    %v103 = vpack.c.bf16 %v96, %v96
    %v104 = vpack.c.bf16 %v97, %v97
    %v105 = vpack.c.bf16 %v98, %v98
    %v106 = vpack.c.bf16 %v99, %v99
    %v107 = vpack.c.bf16 %v100, %v100
    %v108 = vld [vmem:[#allocation5] sm:$0xff]
    %v109 = vld [vmem:[#allocation5 + $0x8] sm:$0xff]
    %v110 = vld [vmem:[#allocation5 + $0x10] sm:$0xff]
    %v111 = vld [vmem:[#allocation5 + $0x18] sm:$0xff]
    %v112 = vld [vmem:[#allocation5 + $0x20] sm:$0xff]
    %v113 = vld [vmem:[#allocation5 + $0x28] sm:$0xff]
    %v114 = vld [vmem:[#allocation5 + $0x30] sm:$0xff]
    %v115 = vld [vmem:[#allocation5 + $0x38] sm:$0xff]
    %v116 = vld [vmem:[#allocation5 + $0x40] sm:$0xff]
    %v117 = vld [vmem:[#allocation5 + $0x48] sm:$0xff]
    %v118 = vld [vmem:[#allocation5 + $0x50] sm:$0xff]
    %v119 = vld [vmem:[#allocation5 + $0x58] sm:$0xff]
    %v120 = vld [vmem:[#allocation5 + $0x60] sm:$0xff]
    %v121 = vld [vmem:[#allocation5 + $0x68] sm:$0xff]
    %v122 = vld [vmem:[#allocation5 + $0x70] sm:$0xff]
    %v123 = vld [vmem:[#allocation5 + $0x78] sm:$0xff]
    %v124 = vld [vmem:[#allocation5 + $0x80] sm:$0xff]
    %v125 = vld [vmem:[#allocation5 + $0x88] sm:$0xff]
    %v126 = vld [vmem:[#allocation5 + $0x90] sm:$0xff]
    %v127 = vld [vmem:[#allocation5 + $0x98] sm:$0xff]
    %v128 = vld [vmem:[#allocation5 + $0xa0] sm:$0xff]
    %v129 = vld [vmem:[#allocation5 + $0xa8] sm:$0xff]
    %v130 = vld [vmem:[#allocation5 + $0xb0] sm:$0xff]
    %v131 = vld [vmem:[#allocation5 + $0xb8] sm:$0xff]
    %v132 = vld [vmem:[#allocation5 + $0xc0] sm:$0xff]
    %v133 = vld [vmem:[#allocation5 + $0xc8] sm:$0xff]
    %v134 = vld [vmem:[#allocation5 + $0xd0] sm:$0xff]
    %v135 = vld [vmem:[#allocation5 + $0xd8] sm:$0xff]
    %v136 = vld [vmem:[#allocation5 + $0xe0] sm:$0xff]
    %v137 = vld [vmem:[#allocation5 + $0xe8] sm:$0xff]
    %v138 = vld [vmem:[#allocation5 + $0xf0] sm:$0xff]
    %v139 = vld [vmem:[#allocation5 + $0xf8] sm:$0xff]
    %v140 = vld [vmem:[#allocation5 + $0x100] sm:$0xff]
    %v141 = vld [vmem:[#allocation5 + $0x108] sm:$0xff]
    %v142 = vld [vmem:[#allocation5 + $0x110] sm:$0xff]
    %v143 = vld [vmem:[#allocation5 + $0x118] sm:$0xff]
    %v144 = vld [vmem:[#allocation5 + $0x120] sm:$0xff]
    %v145 = vld [vmem:[#allocation5 + $0x128] sm:$0xff]
    %v146 = vld [vmem:[#allocation5 + $0x130] sm:$0xff]
    %v147 = vld [vmem:[#allocation5 + $0x138] sm:$0xff]
    %v148 = vld [vmem:[#allocation5 + $0x140] sm:$0xff]
    %v149 = vld [vmem:[#allocation5 + $0x148] sm:$0xff]
    %v150 = vld [vmem:[#allocation5 + $0x150] sm:$0xff]
    %v151 = vld [vmem:[#allocation5 + $0x158] sm:$0xff]
    %v152 = vld [vmem:[#allocation5 + $0x160] sm:$0xff]
    %v153 = vld [vmem:[#allocation5 + $0x168] sm:$0xff]
    %v154 = vld [vmem:[#allocation5 + $0x170] sm:$0xff]
    %v155 = vld [vmem:[#allocation5 + $0x178] sm:$0xff]
    %v156 = vld [vmem:[#allocation5 + $0x180] sm:$0xff]
    %v157 = vld [vmem:[#allocation5 + $0x188] sm:$0xff]
    %v158 = vld [vmem:[#allocation5 + $0x190] sm:$0xff]
    %v159 = vld [vmem:[#allocation5 + $0x198] sm:$0xff]
    %v160 = vld [vmem:[#allocation5 + $0x1a0] sm:$0xff]
    %v161 = vld [vmem:[#allocation5 + $0x1a8] sm:$0xff]
    %v162 = vld [vmem:[#allocation5 + $0x1b0] sm:$0xff]
    %v163 = vld [vmem:[#allocation5 + $0x1b8] sm:$0xff]
    %v164 = vld [vmem:[#allocation5 + $0x1c0] sm:$0xff]
    %v165 = vld [vmem:[#allocation5 + $0x1c8] sm:$0xff]
    %v166 = vld [vmem:[#allocation5 + $0x1d0] sm:$0xff]
    %v167 = vld [vmem:[#allocation5 + $0x1d8] sm:$0xff]
    %v168 = vld [vmem:[#allocation5 + $0x1e0] sm:$0xff]
    %v169 = vld [vmem:[#allocation5 + $0x1e8] sm:$0xff]
    %v170 = vld [vmem:[#allocation5 + $0x1f0] sm:$0xff]
    %v171 = vld [vmem:[#allocation5 + $0x1f8] sm:$0xff]
    %v172 = vld [vmem:[#allocation5 + $0x200] sm:$0xff]
    %v173 = vld [vmem:[#allocation5 + $0x208] sm:$0xff]
    %v174 = vld [vmem:[#allocation5 + $0x210] sm:$0xff]
    %v175 = vld [vmem:[#allocation5 + $0x218] sm:$0xff]
    %v176 = vld [vmem:[#allocation5 + $0x220] sm:$0xff]
    %v177 = vld [vmem:[#allocation5 + $0x228] sm:$0xff]
    %v178 = vld [vmem:[#allocation5 + $0x230] sm:$0xff]
    %v179 = vld [vmem:[#allocation5 + $0x238] sm:$0xff]
    %v180 = vld [vmem:[#allocation5 + $0x240] sm:$0xff]
    %v181 = vld [vmem:[#allocation5 + $0x248] sm:$0xff]
    %v182 = vld [vmem:[#allocation5 + $0x250] sm:$0xff]
    %v183 = vld [vmem:[#allocation5 + $0x258] sm:$0xff]
    %v184 = vld [vmem:[#allocation5 + $0x260] sm:$0xff]
    %v185 = vld [vmem:[#allocation5 + $0x268] sm:$0xff]
    %v186 = vld [vmem:[#allocation5 + $0x270] sm:$0xff]
    %v187 = vld [vmem:[#allocation5 + $0x278] sm:$0xff]
    %v188 = vld [vmem:[#allocation5 + $0x280] sm:$0xff]
    %v189 = vld [vmem:[#allocation5 + $0x288] sm:$0xff]
    %v190 = vld [vmem:[#allocation5 + $0x290] sm:$0xff]
    %v191 = vld [vmem:[#allocation5 + $0x298] sm:$0xff]
    %v192 = vld [vmem:[#allocation5 + $0x2a0] sm:$0xff]
    %v193 = vld [vmem:[#allocation5 + $0x2a8] sm:$0xff]
    %v194 = vld [vmem:[#allocation5 + $0x2b0] sm:$0xff]
    %v195 = vld [vmem:[#allocation5 + $0x2b8] sm:$0xff]
    %v196 = vld [vmem:[#allocation5 + $0x2c0] sm:$0xff]
    %v197 = vld [vmem:[#allocation5 + $0x2c8] sm:$0xff]
    %v198 = vld [vmem:[#allocation5 + $0x2d0] sm:$0xff]
    %v199 = vld [vmem:[#allocation5 + $0x2d8] sm:$0xff]
    %v200 = vld [vmem:[#allocation5 + $0x2e0] sm:$0xff]
    %v201 = vld [vmem:[#allocation5 + $0x2e8] sm:$0xff]
    %v202 = vld [vmem:[#allocation5 + $0x2f0] sm:$0xff]
    %v203 = vld [vmem:[#allocation5 + $0x2f8] sm:$0xff]
    %v204 = vld [vmem:[#allocation5 + $0x300] sm:$0xff]
    %v205 = vld [vmem:[#allocation5 + $0x308] sm:$0xff]
    %v206 = vld [vmem:[#allocation5 + $0x310] sm:$0xff]
    %v207 = vld [vmem:[#allocation5 + $0x318] sm:$0xff]
    %v208 = vld [vmem:[#allocation5 + $0x320] sm:$0xff]
    %v209 = vld [vmem:[#allocation5 + $0x328] sm:$0xff]
    %v210 = vld [vmem:[#allocation5 + $0x330] sm:$0xff]
    %v211 = vld [vmem:[#allocation5 + $0x338] sm:$0xff]
    %v212 = vld [vmem:[#allocation5 + $0x340] sm:$0xff]
    %v213 = vld [vmem:[#allocation5 + $0x348] sm:$0xff]
    %v214 = vld [vmem:[#allocation5 + $0x350] sm:$0xff]
    %v215 = vld [vmem:[#allocation5 + $0x358] sm:$0xff]
    %v216 = vld [vmem:[#allocation5 + $0x360] sm:$0xff]
    %v217 = vld [vmem:[#allocation5 + $0x368] sm:$0xff]
    %v218 = vld [vmem:[#allocation5 + $0x370] sm:$0xff]
    %v219 = vld [vmem:[#allocation5 + $0x378] sm:$0xff]
    %v220 = vld [vmem:[#allocation5 + $0x380] sm:$0xff]
    %v221 = vld [vmem:[#allocation5 + $0x388] sm:$0xff]
    %v222 = vld [vmem:[#allocation5 + $0x390] sm:$0xff]
    %v223 = vld [vmem:[#allocation5 + $0x398] sm:$0xff]
    %v224 = vld [vmem:[#allocation5 + $0x3a0] sm:$0xff]
    %v225 = vld [vmem:[#allocation5 + $0x3a8] sm:$0xff]
    %v226 = vld [vmem:[#allocation5 + $0x3b0] sm:$0xff]
    %v227 = vld [vmem:[#allocation5 + $0x3b8] sm:$0xff]
    %v228 = vld [vmem:[#allocation5 + $0x3c0] sm:$0xff]
    %v229 = vld [vmem:[#allocation5 + $0x3c8] sm:$0xff]
    %v230 = vld [vmem:[#allocation5 + $0x3d0] sm:$0xff]
    %v231 = vld [vmem:[#allocation5 + $0x3d8] sm:$0xff]
    %v232 = vld [vmem:[#allocation5 + $0x3e0] sm:$0xff]
    %v233 = vld [vmem:[#allocation5 + $0x3e8] sm:$0xff]
    %v234 = vld [vmem:[#allocation5 + $0x3f0] sm:$0xff]
    %v235 = vld [vmem:[#allocation5 + $0x3f8] sm:$0xff]
    %v236 = vld [vmem:[#allocation5 + $0x400] sm:$0xff]
    %v237 = vld [vmem:[#allocation5 + $0x408] sm:$0xff]
    %v238 = vld [vmem:[#allocation5 + $0x410] sm:$0xff]
    %v239 = vld [vmem:[#allocation5 + $0x418] sm:$0xff]
    %v240 = vld [vmem:[#allocation5 + $0x420] sm:$0xff]
    %v241 = vld [vmem:[#allocation5 + $0x428] sm:$0xff]
    %v242 = vld [vmem:[#allocation5 + $0x430] sm:$0xff]
    %v243 = vld [vmem:[#allocation5 + $0x438] sm:$0xff]
    %v244 = vld [vmem:[#allocation5 + $0x440] sm:$0xff]
    %v245 = vld [vmem:[#allocation5 + $0x448] sm:$0xff]
    %v246 = vld [vmem:[#allocation5 + $0x450] sm:$0xff]
    %v247 = vld [vmem:[#allocation5 + $0x458] sm:$0xff]
    %v248 = vld [vmem:[#allocation5 + $0x460] sm:$0xff]
    %v249 = vld [vmem:[#allocation5 + $0x468] sm:$0xff]
    %v250 = vld [vmem:[#allocation5 + $0x470] sm:$0xff]
    %v251 = vld [vmem:[#allocation5 + $0x478] sm:$0xff]
    %v252 = vld [vmem:[#allocation5 + $0x480] sm:$0xff]
    %v253 = vld [vmem:[#allocation5 + $0x488] sm:$0xff]
    %v254 = vld [vmem:[#allocation5 + $0x490] sm:$0xff]
    %v255 = vld [vmem:[#allocation5 + $0x498] sm:$0xff]
    %v256 = vld [vmem:[#allocation5 + $0x4a0] sm:$0xff]
    %v257 = vld [vmem:[#allocation5 + $0x4a8] sm:$0xff]
    %v258 = vld [vmem:[#allocation5 + $0x4b0] sm:$0xff]
    %v259 = vld [vmem:[#allocation5 + $0x4b8] sm:$0xff]
    %v260 = vld [vmem:[#allocation5 + $0x4c0] sm:$0xff]
    %v261 = vld [vmem:[#allocation5 + $0x4c8] sm:$0xff]
    %v262 = vld [vmem:[#allocation5 + $0x4d0] sm:$0xff]
    %v263 = vld [vmem:[#allocation5 + $0x4d8] sm:$0xff]
    %v264 = vld [vmem:[#allocation5 + $0x4e0] sm:$0xff]
    %v265 = vld [vmem:[#allocation5 + $0x4e8] sm:$0xff]
    %v266 = vld [vmem:[#allocation5 + $0x4f0] sm:$0xff]
    %v267 = vld [vmem:[#allocation5 + $0x4f8] sm:$0xff]
    %v268 = vld [vmem:[#allocation5 + $0x500] sm:$0xff]
    %v269 = vld [vmem:[#allocation5 + $0x508] sm:$0xff]
    %v270 = vld [vmem:[#allocation5 + $0x510] sm:$0xff]
    %v271 = vld [vmem:[#allocation5 + $0x518] sm:$0xff]
    %v272 = vld [vmem:[#allocation5 + $0x520] sm:$0xff]
    %v273 = vld [vmem:[#allocation5 + $0x528] sm:$0xff]
    %v274 = vld [vmem:[#allocation5 + $0x530] sm:$0xff]
    %v275 = vld [vmem:[#allocation5 + $0x538] sm:$0xff]
    %v276 = vld [vmem:[#allocation5 + $0x540] sm:$0xff]
    %v277 = vld [vmem:[#allocation5 + $0x548] sm:$0xff]
    %v278 = vld [vmem:[#allocation5 + $0x550] sm:$0xff]
    %v279 = vld [vmem:[#allocation5 + $0x558] sm:$0xff]
    %v280 = vld [vmem:[#allocation5 + $0x560] sm:$0xff]
    %v281 = vld [vmem:[#allocation5 + $0x568] sm:$0xff]
    %v282 = vld [vmem:[#allocation5 + $0x570] sm:$0xff]
    %v283 = vld [vmem:[#allocation5 + $0x578] sm:$0xff]
    %v284 = vld [vmem:[#allocation5 + $0x580] sm:$0xff]
    %v285 = vld [vmem:[#allocation5 + $0x588] sm:$0xff]
    %v286 = vld [vmem:[#allocation5 + $0x590] sm:$0xff]
    %v287 = vld [vmem:[#allocation5 + $0x598] sm:$0xff]
    %v288 = vld [vmem:[#allocation5 + $0x5a0] sm:$0xff]
    %v289 = vld [vmem:[#allocation5 + $0x5a8] sm:$0xff]
    %v290 = vld [vmem:[#allocation5 + $0x5b0] sm:$0xff]
    %v291 = vld [vmem:[#allocation5 + $0x5b8] sm:$0xff]
    %v292 = vld [vmem:[#allocation5 + $0x5c0] sm:$0xff]
    %v293 = vld [vmem:[#allocation5 + $0x5c8] sm:$0xff]
    %v294 = vld [vmem:[#allocation5 + $0x5d0] sm:$0xff]
    %v295 = vld [vmem:[#allocation5 + $0x5d8] sm:$0xff]
    %v296 = vld [vmem:[#allocation5 + $0x5e0] sm:$0xff]
    %v297 = vld [vmem:[#allocation5 + $0x5e8] sm:$0xff]
    %v298 = vld [vmem:[#allocation5 + $0x5f0] sm:$0xff]
    %v299 = vld [vmem:[#allocation5 + $0x5f8] sm:$0xff]
    %v300 = vld [vmem:[#allocation5 + $0x600] sm:$0xff]
    %v301 = vld [vmem:[#allocation5 + $0x608] sm:$0xff]
    %v302 = vld [vmem:[#allocation5 + $0x610] sm:$0xff]
    %v303 = vld [vmem:[#allocation5 + $0x618] sm:$0xff]
    %v304 = vld [vmem:[#allocation7] sm:$0xf]
    %v306 = vperm.slane %v304, 0
    %v307 = vperm.slane %v304, 1
    %v308 = vperm.slane %v304, 2
    %v309 = vperm.slane %v304, 3
    %v510 = vunpack.c.l.b16 %v108
    %v511 = vunpack.c.h.b16 %v108
    %v512 = vunpack.c.l.b16 %v109
    %v513 = vunpack.c.h.b16 %v109
    %v514 = vunpack.c.l.b16 %v110
    %v515 = vunpack.c.h.b16 %v110
    %v516 = vunpack.c.l.b16 %v111
    %v517 = vunpack.c.h.b16 %v111
    %v518 = vunpack.c.l.b16 %v112
    %v519 = vunpack.c.h.b16 %v112
    %v520 = vunpack.c.l.b16 %v113
    %v521 = vunpack.c.h.b16 %v113
    %v522 = vunpack.c.l.b16 %v114
    %v523 = vunpack.c.h.b16 %v114
    %v524 = vunpack.c.l.b16 %v115
    %v525 = vunpack.c.h.b16 %v115
    %v526 = vunpack.c.l.b16 %v116
    %v527 = vunpack.c.h.b16 %v116
    %v528 = vunpack.c.l.b16 %v117
    %v529 = vunpack.c.h.b16 %v117
    %v530 = vunpack.c.l.b16 %v118
    %v531 = vunpack.c.h.b16 %v118
    %v532 = vunpack.c.l.b16 %v119
    %v533 = vunpack.c.h.b16 %v119
    %v534 = vunpack.c.l.b16 %v120
    %v535 = vunpack.c.h.b16 %v120
    %v536 = vunpack.c.l.b16 %v121
    %v537 = vunpack.c.h.b16 %v121
    %v538 = vunpack.c.l.b16 %v122
    %v539 = vunpack.c.h.b16 %v122
    %v540 = vunpack.c.l.b16 %v123
    %v541 = vunpack.c.h.b16 %v123
    %v542 = vunpack.c.l.b16 %v124
    %v543 = vunpack.c.h.b16 %v124
    %v544 = vunpack.c.l.b16 %v125
    %v545 = vunpack.c.h.b16 %v125
    %v546 = vunpack.c.l.b16 %v126
    %v547 = vunpack.c.h.b16 %v126
    %v548 = vunpack.c.l.b16 %v127
    %v549 = vunpack.c.h.b16 %v127
    %v550 = vunpack.c.l.b16 %v128
    %v551 = vunpack.c.h.b16 %v128
    %v552 = vunpack.c.l.b16 %v129
    %v553 = vunpack.c.h.b16 %v129
    %v554 = vunpack.c.l.b16 %v130
    %v555 = vunpack.c.h.b16 %v130
    %v556 = vunpack.c.l.b16 %v131
    %v557 = vunpack.c.h.b16 %v131
    %v558 = vunpack.c.l.b16 %v132
    %v559 = vunpack.c.h.b16 %v132
    %v560 = vunpack.c.l.b16 %v133
    %v561 = vunpack.c.h.b16 %v133
    %v562 = vunpack.c.l.b16 %v134
    %v563 = vunpack.c.h.b16 %v134
    %v564 = vunpack.c.l.b16 %v135
    %v565 = vunpack.c.h.b16 %v135
    %v566 = vunpack.c.l.b16 %v136
    %v567 = vunpack.c.h.b16 %v136
    %v568 = vunpack.c.l.b16 %v137
    %v569 = vunpack.c.h.b16 %v137
    %v570 = vunpack.c.l.b16 %v138
    %v571 = vunpack.c.h.b16 %v138
    %v572 = vunpack.c.l.b16 %v139
    %v573 = vunpack.c.h.b16 %v139
    %v574 = vunpack.c.l.b16 %v140
    %v575 = vunpack.c.h.b16 %v140
    %v576 = vunpack.c.l.b16 %v141
    %v577 = vunpack.c.h.b16 %v141
    %v578 = vunpack.c.l.b16 %v142
    %v579 = vunpack.c.h.b16 %v142
    %v580 = vunpack.c.l.b16 %v143
    %v581 = vunpack.c.h.b16 %v143
    %v582 = vunpack.c.l.b16 %v144
    %v583 = vunpack.c.h.b16 %v144
    %v584 = vunpack.c.l.b16 %v145
    %v585 = vunpack.c.h.b16 %v145
    %v586 = vunpack.c.l.b16 %v146
    %v587 = vunpack.c.h.b16 %v146
    %v588 = vunpack.c.l.b16 %v147
    %v589 = vunpack.c.h.b16 %v147
    %v590 = vunpack.c.l.b16 %v148
    %v591 = vunpack.c.h.b16 %v148
    %v592 = vunpack.c.l.b16 %v149
    %v593 = vunpack.c.h.b16 %v149
    %v594 = vunpack.c.l.b16 %v150
    %v595 = vunpack.c.h.b16 %v150
    %v596 = vunpack.c.l.b16 %v151
    %v597 = vunpack.c.h.b16 %v151
    %v598 = vunpack.c.l.b16 %v152
    %v599 = vunpack.c.h.b16 %v152
    %v600 = vunpack.c.l.b16 %v153
    %v601 = vunpack.c.h.b16 %v153
    %v602 = vunpack.c.l.b16 %v154
    %v603 = vunpack.c.h.b16 %v154
    %v604 = vunpack.c.l.b16 %v155
    %v605 = vunpack.c.h.b16 %v155
    %v606 = vunpack.c.l.b16 %v156
    %v607 = vunpack.c.h.b16 %v156
    %v608 = vunpack.c.l.b16 %v157
    %v609 = vunpack.c.h.b16 %v157
    %v610 = vunpack.c.l.b16 %v158
    %v611 = vunpack.c.h.b16 %v158
    %v612 = vunpack.c.l.b16 %v159
    %v613 = vunpack.c.h.b16 %v159
    %v614 = vunpack.c.l.b16 %v160
    %v615 = vunpack.c.h.b16 %v160
    %v616 = vunpack.c.l.b16 %v161
    %v617 = vunpack.c.h.b16 %v161
    %v618 = vunpack.c.l.b16 %v162
    %v619 = vunpack.c.h.b16 %v162
    %v620 = vunpack.c.l.b16 %v163
    %v621 = vunpack.c.h.b16 %v163
    %v622 = vunpack.c.l.b16 %v164
    %v623 = vunpack.c.h.b16 %v164
    %v624 = vunpack.c.l.b16 %v165
    %v625 = vunpack.c.h.b16 %v165
    %v626 = vunpack.c.l.b16 %v166
    %v627 = vunpack.c.h.b16 %v166
    %v628 = vunpack.c.l.b16 %v167
    %v629 = vunpack.c.h.b16 %v167
    %v630 = vunpack.c.l.b16 %v168
    %v631 = vunpack.c.h.b16 %v168
    %v632 = vunpack.c.l.b16 %v169
    %v633 = vunpack.c.h.b16 %v169
    %v634 = vunpack.c.l.b16 %v170
    %v635 = vunpack.c.h.b16 %v170
    %v636 = vunpack.c.l.b16 %v171
    %v637 = vunpack.c.h.b16 %v171
    %v638 = vunpack.c.l.b16 %v172
    %v639 = vunpack.c.h.b16 %v172
    %v640 = vunpack.c.l.b16 %v173
    %v641 = vunpack.c.h.b16 %v173
    %v642 = vunpack.c.l.b16 %v174
    %v643 = vunpack.c.h.b16 %v174
    %v644 = vunpack.c.l.b16 %v175
    %v645 = vunpack.c.h.b16 %v175
    %v646 = vunpack.c.l.b16 %v176
    %v647 = vunpack.c.h.b16 %v176
    %v648 = vunpack.c.l.b16 %v177
    %v649 = vunpack.c.h.b16 %v177
    %v650 = vunpack.c.l.b16 %v178
    %v651 = vunpack.c.h.b16 %v178
    %v652 = vunpack.c.l.b16 %v179
    %v653 = vunpack.c.h.b16 %v179
    %v654 = vunpack.c.l.b16 %v180
    %v655 = vunpack.c.h.b16 %v180
    %v656 = vunpack.c.l.b16 %v181
    %v657 = vunpack.c.h.b16 %v181
    %v658 = vunpack.c.l.b16 %v182
    %v659 = vunpack.c.h.b16 %v182
    %v660 = vunpack.c.l.b16 %v183
    %v661 = vunpack.c.h.b16 %v183
    %v662 = vunpack.c.l.b16 %v184
    %v663 = vunpack.c.h.b16 %v184
    %v664 = vunpack.c.l.b16 %v185
    %v665 = vunpack.c.h.b16 %v185
    %v666 = vunpack.c.l.b16 %v186
    %v667 = vunpack.c.h.b16 %v186
    %v668 = vunpack.c.l.b16 %v187
    %v669 = vunpack.c.h.b16 %v187
    %v670 = vunpack.c.l.b16 %v188
    %v671 = vunpack.c.h.b16 %v188
    %v672 = vunpack.c.l.b16 %v189
    %v673 = vunpack.c.h.b16 %v189
    %v674 = vunpack.c.l.b16 %v190
    %v675 = vunpack.c.h.b16 %v190
    %v676 = vunpack.c.l.b16 %v191
    %v677 = vunpack.c.h.b16 %v191
    %v678 = vunpack.c.l.b16 %v192
    %v679 = vunpack.c.h.b16 %v192
    %v680 = vunpack.c.l.b16 %v193
    %v681 = vunpack.c.h.b16 %v193
    %v682 = vunpack.c.l.b16 %v194
    %v683 = vunpack.c.h.b16 %v194
    %v684 = vunpack.c.l.b16 %v195
    %v685 = vunpack.c.h.b16 %v195
    %v686 = vunpack.c.l.b16 %v196
    %v687 = vunpack.c.h.b16 %v196
    %v688 = vunpack.c.l.b16 %v197
    %v689 = vunpack.c.h.b16 %v197
    %v690 = vunpack.c.l.b16 %v198
    %v691 = vunpack.c.h.b16 %v198
    %v692 = vunpack.c.l.b16 %v199
    %v693 = vunpack.c.h.b16 %v199
    %v694 = vunpack.c.l.b16 %v200
    %v695 = vunpack.c.h.b16 %v200
    %v696 = vunpack.c.l.b16 %v201
    %v697 = vunpack.c.h.b16 %v201
    %v698 = vunpack.c.l.b16 %v202
    %v699 = vunpack.c.h.b16 %v202
    %v700 = vunpack.c.l.b16 %v203
    %v701 = vunpack.c.h.b16 %v203
    %v702 = vunpack.c.l.b16 %v204
    %v703 = vunpack.c.h.b16 %v204
    %v704 = vunpack.c.l.b16 %v205
    %v705 = vunpack.c.h.b16 %v205
    %v706 = vunpack.c.l.b16 %v206
    %v707 = vunpack.c.h.b16 %v206
    %v708 = vunpack.c.l.b16 %v207
    %v709 = vunpack.c.h.b16 %v207
    %v710 = vunpack.c.l.b16 %v208
    %v711 = vunpack.c.h.b16 %v208
    %v712 = vunpack.c.l.b16 %v209
    %v713 = vunpack.c.h.b16 %v209
    %v714 = vunpack.c.l.b16 %v210
    %v715 = vunpack.c.h.b16 %v210
    %v716 = vunpack.c.l.b16 %v211
    %v717 = vunpack.c.h.b16 %v211
    %v718 = vunpack.c.l.b16 %v212
    %v719 = vunpack.c.h.b16 %v212
    %v720 = vunpack.c.l.b16 %v213
    %v721 = vunpack.c.h.b16 %v213
    %v722 = vunpack.c.l.b16 %v214
    %v723 = vunpack.c.h.b16 %v214
    %v724 = vunpack.c.l.b16 %v215
    %v725 = vunpack.c.h.b16 %v215
    %v726 = vunpack.c.l.b16 %v216
    %v727 = vunpack.c.h.b16 %v216
    %v728 = vunpack.c.l.b16 %v217
    %v729 = vunpack.c.h.b16 %v217
    %v730 = vunpack.c.l.b16 %v218
    %v731 = vunpack.c.h.b16 %v218
    %v732 = vunpack.c.l.b16 %v219
    %v733 = vunpack.c.h.b16 %v219
    %v734 = vunpack.c.l.b16 %v220
    %v735 = vunpack.c.h.b16 %v220
    %v736 = vunpack.c.l.b16 %v221
    %v737 = vunpack.c.h.b16 %v221
    %v738 = vunpack.c.l.b16 %v222
    %v739 = vunpack.c.h.b16 %v222
    %v740 = vunpack.c.l.b16 %v223
    %v741 = vunpack.c.h.b16 %v223
    %v742 = vunpack.c.l.b16 %v224
    %v743 = vunpack.c.h.b16 %v224
    %v744 = vunpack.c.l.b16 %v225
    %v745 = vunpack.c.h.b16 %v225
    %v746 = vunpack.c.l.b16 %v226
    %v747 = vunpack.c.h.b16 %v226
    %v748 = vunpack.c.l.b16 %v227
    %v749 = vunpack.c.h.b16 %v227
    %v750 = vunpack.c.l.b16 %v228
    %v751 = vunpack.c.h.b16 %v228
    %v752 = vunpack.c.l.b16 %v229
    %v753 = vunpack.c.h.b16 %v229
    %v754 = vunpack.c.l.b16 %v230
    %v755 = vunpack.c.h.b16 %v230
    %v756 = vunpack.c.l.b16 %v231
    %v757 = vunpack.c.h.b16 %v231
    %v758 = vunpack.c.l.b16 %v232
    %v759 = vunpack.c.h.b16 %v232
    %v760 = vunpack.c.l.b16 %v233
    %v761 = vunpack.c.h.b16 %v233
    %v762 = vunpack.c.l.b16 %v234
    %v763 = vunpack.c.h.b16 %v234
    %v764 = vunpack.c.l.b16 %v235
    %v765 = vunpack.c.h.b16 %v235
    %v766 = vunpack.c.l.b16 %v236
    %v767 = vunpack.c.h.b16 %v236
    %v768 = vunpack.c.l.b16 %v237
    %v769 = vunpack.c.h.b16 %v237
    %v770 = vunpack.c.l.b16 %v238
    %v771 = vunpack.c.h.b16 %v238
    %v772 = vunpack.c.l.b16 %v239
    %v773 = vunpack.c.h.b16 %v239
    %v774 = vunpack.c.l.b16 %v240
    %v775 = vunpack.c.h.b16 %v240
    %v776 = vunpack.c.l.b16 %v241
    %v777 = vunpack.c.h.b16 %v241
    %v778 = vunpack.c.l.b16 %v242
    %v779 = vunpack.c.h.b16 %v242
    %v780 = vunpack.c.l.b16 %v243
    %v781 = vunpack.c.h.b16 %v243
    %v782 = vunpack.c.l.b16 %v244
    %v783 = vunpack.c.h.b16 %v244
    %v784 = vunpack.c.l.b16 %v245
    %v785 = vunpack.c.h.b16 %v245
    %v786 = vunpack.c.l.b16 %v246
    %v787 = vunpack.c.h.b16 %v246
    %v788 = vunpack.c.l.b16 %v247
    %v789 = vunpack.c.h.b16 %v247
    %v790 = vunpack.c.l.b16 %v248
    %v791 = vunpack.c.h.b16 %v248
    %v792 = vunpack.c.l.b16 %v249
    %v793 = vunpack.c.h.b16 %v249
    %v794 = vunpack.c.l.b16 %v250
    %v795 = vunpack.c.h.b16 %v250
    %v796 = vunpack.c.l.b16 %v251
    %v797 = vunpack.c.h.b16 %v251
    %v798 = vunpack.c.l.b16 %v252
    %v799 = vunpack.c.h.b16 %v252
    %v800 = vunpack.c.l.b16 %v253
    %v801 = vunpack.c.h.b16 %v253
    %v802 = vunpack.c.l.b16 %v254
    %v803 = vunpack.c.h.b16 %v254
    %v804 = vunpack.c.l.b16 %v255
    %v805 = vunpack.c.h.b16 %v255
    %v806 = vunpack.c.l.b16 %v256
    %v807 = vunpack.c.h.b16 %v256
    %v808 = vunpack.c.l.b16 %v257
    %v809 = vunpack.c.h.b16 %v257
    %v810 = vunpack.c.l.b16 %v258
    %v811 = vunpack.c.h.b16 %v258
    %v812 = vunpack.c.l.b16 %v259
    %v813 = vunpack.c.h.b16 %v259
    %v814 = vunpack.c.l.b16 %v260
    %v815 = vunpack.c.h.b16 %v260
    %v816 = vunpack.c.l.b16 %v261
    %v817 = vunpack.c.h.b16 %v261
    %v818 = vunpack.c.l.b16 %v262
    %v819 = vunpack.c.h.b16 %v262
    %v820 = vunpack.c.l.b16 %v263
    %v821 = vunpack.c.h.b16 %v263
    %v822 = vunpack.c.l.b16 %v264
    %v823 = vunpack.c.h.b16 %v264
    %v824 = vunpack.c.l.b16 %v265
    %v825 = vunpack.c.h.b16 %v265
    %v826 = vunpack.c.l.b16 %v266
    %v827 = vunpack.c.h.b16 %v266
    %v828 = vunpack.c.l.b16 %v267
    %v829 = vunpack.c.h.b16 %v267
    %v830 = vunpack.c.l.b16 %v268
    %v831 = vunpack.c.h.b16 %v268
    %v832 = vunpack.c.l.b16 %v269
    %v833 = vunpack.c.h.b16 %v269
    %v834 = vunpack.c.l.b16 %v270
    %v835 = vunpack.c.h.b16 %v270
    %v836 = vunpack.c.l.b16 %v271
    %v837 = vunpack.c.h.b16 %v271
    %v838 = vunpack.c.l.b16 %v272
    %v839 = vunpack.c.h.b16 %v272
    %v840 = vunpack.c.l.b16 %v273
    %v841 = vunpack.c.h.b16 %v273
    %v842 = vunpack.c.l.b16 %v274
    %v843 = vunpack.c.h.b16 %v274
    %v844 = vunpack.c.l.b16 %v275
    %v845 = vunpack.c.h.b16 %v275
    %v846 = vunpack.c.l.b16 %v276
    %v847 = vunpack.c.h.b16 %v276
    %v848 = vunpack.c.l.b16 %v277
    %v849 = vunpack.c.h.b16 %v277
    %v850 = vunpack.c.l.b16 %v278
    %v851 = vunpack.c.h.b16 %v278
    %v852 = vunpack.c.l.b16 %v279
    %v853 = vunpack.c.h.b16 %v279
    %v854 = vunpack.c.l.b16 %v280
    %v855 = vunpack.c.h.b16 %v280
    %v856 = vunpack.c.l.b16 %v281
    %v857 = vunpack.c.h.b16 %v281
    %v858 = vunpack.c.l.b16 %v282
    %v859 = vunpack.c.h.b16 %v282
    %v860 = vunpack.c.l.b16 %v283
    %v861 = vunpack.c.h.b16 %v283
    %v862 = vunpack.c.l.b16 %v284
    %v863 = vunpack.c.h.b16 %v284
    %v864 = vunpack.c.l.b16 %v285
    %v865 = vunpack.c.h.b16 %v285
    %v866 = vunpack.c.l.b16 %v286
    %v867 = vunpack.c.h.b16 %v286
    %v868 = vunpack.c.l.b16 %v287
    %v869 = vunpack.c.h.b16 %v287
    %v870 = vunpack.c.l.b16 %v288
    %v871 = vunpack.c.h.b16 %v288
    %v872 = vunpack.c.l.b16 %v289
    %v873 = vunpack.c.h.b16 %v289
    %v874 = vunpack.c.l.b16 %v290
    %v875 = vunpack.c.h.b16 %v290
    %v876 = vunpack.c.l.b16 %v291
    %v877 = vunpack.c.h.b16 %v291
    %v878 = vunpack.c.l.b16 %v292
    %v879 = vunpack.c.h.b16 %v292
    %v880 = vunpack.c.l.b16 %v293
    %v881 = vunpack.c.h.b16 %v293
    %v882 = vunpack.c.l.b16 %v294
    %v883 = vunpack.c.h.b16 %v294
    %v884 = vunpack.c.l.b16 %v295
    %v885 = vunpack.c.h.b16 %v295
    %v886 = vunpack.c.l.b16 %v296
    %v887 = vunpack.c.h.b16 %v296
    %v888 = vunpack.c.l.b16 %v297
    %v889 = vunpack.c.h.b16 %v297
    %v890 = vunpack.c.l.b16 %v298
    %v891 = vunpack.c.h.b16 %v298
    %v892 = vunpack.c.l.b16 %v299
    %v893 = vunpack.c.h.b16 %v299
    %v894 = vunpack.c.l.b16 %v300
    %v895 = vunpack.c.h.b16 %v300
    %v896 = vunpack.c.l.b16 %v301
    %v897 = vunpack.c.h.b16 %v301
    %v898 = vunpack.c.l.b16 %v302
    %v899 = vunpack.c.h.b16 %v302
    %v900 = vunpack.c.l.b16 %v303
    %v901 = vunpack.c.h.b16 %v303
    %v902 = vpack.c.b16 %v514, %v510
    %v903 = vpack.c.b16 %v515, %v511
    %v904 = vpack.c.b16 %v516, %v512
    %v905 = vpack.c.b16 %v517, %v513
    %v906 = vpack.c.b16 %v522, %v518
    %v907 = vpack.c.b16 %v523, %v519
    %v908 = vpack.c.b16 %v524, %v520
    %v909 = vpack.c.b16 %v525, %v521
    %v910 = vpack.c.b16 %v530, %v526
    %v911 = vpack.c.b16 %v531, %v527
    %v912 = vpack.c.b16 %v532, %v528
    %v913 = vpack.c.b16 %v533, %v529
    %v914 = vpack.c.b16 %v538, %v534
    %v915 = vpack.c.b16 %v539, %v535
    %v916 = vpack.c.b16 %v540, %v536
    %v917 = vpack.c.b16 %v541, %v537
    %v918 = vpack.c.b16 %v546, %v542
    %v919 = vpack.c.b16 %v547, %v543
    %v920 = vpack.c.b16 %v548, %v544
    %v921 = vpack.c.b16 %v549, %v545
    %v922 = vpack.c.b16 %v554, %v550
    %v923 = vpack.c.b16 %v555, %v551
    %v924 = vpack.c.b16 %v556, %v552
    %v925 = vpack.c.b16 %v557, %v553
    %v926 = vpack.c.b16 %v562, %v558
    %v927 = vpack.c.b16 %v563, %v559
    %v928 = vpack.c.b16 %v564, %v560
    %v929 = vpack.c.b16 %v565, %v561
    %v930 = vpack.c.b16 %v570, %v566
    %v931 = vpack.c.b16 %v571, %v567
    %v932 = vpack.c.b16 %v572, %v568
    %v933 = vpack.c.b16 %v573, %v569
    %v934 = vpack.c.b16 %v578, %v574
    %v935 = vpack.c.b16 %v579, %v575
    %v936 = vpack.c.b16 %v580, %v576
    %v937 = vpack.c.b16 %v581, %v577
    %v938 = vpack.c.b16 %v586, %v582
    %v939 = vpack.c.b16 %v587, %v583
    %v940 = vpack.c.b16 %v588, %v584
    %v941 = vpack.c.b16 %v589, %v585
    %v942 = vpack.c.b16 %v594, %v590
    %v943 = vpack.c.b16 %v595, %v591
    %v944 = vpack.c.b16 %v596, %v592
    %v945 = vpack.c.b16 %v597, %v593
    %v946 = vpack.c.b16 %v602, %v598
    %v947 = vpack.c.b16 %v603, %v599
    %v948 = vpack.c.b16 %v604, %v600
    %v949 = vpack.c.b16 %v605, %v601
    %v950 = vpack.c.b16 %v610, %v606
    %v951 = vpack.c.b16 %v611, %v607
    %v952 = vpack.c.b16 %v612, %v608
    %v953 = vpack.c.b16 %v613, %v609
    %v954 = vpack.c.b16 %v618, %v614
    %v955 = vpack.c.b16 %v619, %v615
    %v956 = vpack.c.b16 %v620, %v616
    %v957 = vpack.c.b16 %v621, %v617
    %v958 = vpack.c.b16 %v626, %v622
    %v959 = vpack.c.b16 %v627, %v623
    %v960 = vpack.c.b16 %v628, %v624
    %v961 = vpack.c.b16 %v629, %v625
    %v962 = vpack.c.b16 %v634, %v630
    %v963 = vpack.c.b16 %v635, %v631
    %v964 = vpack.c.b16 %v636, %v632
    %v965 = vpack.c.b16 %v637, %v633
    %v966 = vpack.c.b16 %v642, %v638
    %v967 = vpack.c.b16 %v643, %v639
    %v968 = vpack.c.b16 %v644, %v640
    %v969 = vpack.c.b16 %v645, %v641
    %v970 = vpack.c.b16 %v650, %v646
    %v971 = vpack.c.b16 %v651, %v647
    %v972 = vpack.c.b16 %v652, %v648
    %v973 = vpack.c.b16 %v653, %v649
    %v974 = vpack.c.b16 %v658, %v654
    %v975 = vpack.c.b16 %v659, %v655
    %v976 = vpack.c.b16 %v660, %v656
    %v977 = vpack.c.b16 %v661, %v657
    %v978 = vpack.c.b16 %v666, %v662
    %v979 = vpack.c.b16 %v667, %v663
    %v980 = vpack.c.b16 %v668, %v664
    %v981 = vpack.c.b16 %v669, %v665
    %v982 = vpack.c.b16 %v674, %v670
    %v983 = vpack.c.b16 %v675, %v671
    %v984 = vpack.c.b16 %v676, %v672
    %v985 = vpack.c.b16 %v677, %v673
    %v986 = vpack.c.b16 %v682, %v678
    %v987 = vpack.c.b16 %v683, %v679
    %v988 = vpack.c.b16 %v684, %v680
    %v989 = vpack.c.b16 %v685, %v681
    %v990 = vpack.c.b16 %v690, %v686
    %v991 = vpack.c.b16 %v691, %v687
    %v992 = vpack.c.b16 %v692, %v688
    %v993 = vpack.c.b16 %v693, %v689
    %v994 = vpack.c.b16 %v698, %v694
    %v995 = vpack.c.b16 %v699, %v695
    %v996 = vpack.c.b16 %v700, %v696
    %v997 = vpack.c.b16 %v701, %v697
    %v998 = vpack.c.b16 %v706, %v702
    %v999 = vpack.c.b16 %v707, %v703
    %v1000 = vpack.c.b16 %v708, %v704
    %v1001 = vpack.c.b16 %v709, %v705
    %v1002 = vpack.c.b16 %v714, %v710
    %v1003 = vpack.c.b16 %v715, %v711
    %v1004 = vpack.c.b16 %v716, %v712
    %v1005 = vpack.c.b16 %v717, %v713
    %v1006 = vpack.c.b16 %v722, %v718
    %v1007 = vpack.c.b16 %v723, %v719
    %v1008 = vpack.c.b16 %v724, %v720
    %v1009 = vpack.c.b16 %v725, %v721
    %v1010 = vpack.c.b16 %v730, %v726
    %v1011 = vpack.c.b16 %v731, %v727
    %v1012 = vpack.c.b16 %v732, %v728
    %v1013 = vpack.c.b16 %v733, %v729
    %v1014 = vpack.c.b16 %v738, %v734
    %v1015 = vpack.c.b16 %v739, %v735
    %v1016 = vpack.c.b16 %v740, %v736
    %v1017 = vpack.c.b16 %v741, %v737
    %v1018 = vpack.c.b16 %v746, %v742
    %v1019 = vpack.c.b16 %v747, %v743
    %v1020 = vpack.c.b16 %v748, %v744
    %v1021 = vpack.c.b16 %v749, %v745
    %v1022 = vpack.c.b16 %v754, %v750
    %v1023 = vpack.c.b16 %v755, %v751
    %v1024 = vpack.c.b16 %v756, %v752
    %v1025 = vpack.c.b16 %v757, %v753
    %v1026 = vpack.c.b16 %v762, %v758
    %v1027 = vpack.c.b16 %v763, %v759
    %v1028 = vpack.c.b16 %v764, %v760
    %v1029 = vpack.c.b16 %v765, %v761
    %v1030 = vpack.c.b16 %v770, %v766
    %v1031 = vpack.c.b16 %v771, %v767
    %v1032 = vpack.c.b16 %v772, %v768
    %v1033 = vpack.c.b16 %v773, %v769
    %v1034 = vpack.c.b16 %v778, %v774
    %v1035 = vpack.c.b16 %v779, %v775
    %v1036 = vpack.c.b16 %v780, %v776
    %v1037 = vpack.c.b16 %v781, %v777
    %v1038 = vpack.c.b16 %v786, %v782
    %v1039 = vpack.c.b16 %v787, %v783
    %v1040 = vpack.c.b16 %v788, %v784
    %v1041 = vpack.c.b16 %v789, %v785
    %v1042 = vpack.c.b16 %v794, %v790
    %v1043 = vpack.c.b16 %v795, %v791
    %v1044 = vpack.c.b16 %v796, %v792
    %v1045 = vpack.c.b16 %v797, %v793
    %v1046 = vpack.c.b16 %v802, %v798
    %v1047 = vpack.c.b16 %v803, %v799
    %v1048 = vpack.c.b16 %v804, %v800
    %v1049 = vpack.c.b16 %v805, %v801
    %v1050 = vpack.c.b16 %v810, %v806
    %v1051 = vpack.c.b16 %v811, %v807
    %v1052 = vpack.c.b16 %v812, %v808
    %v1053 = vpack.c.b16 %v813, %v809
    %v1054 = vpack.c.b16 %v818, %v814
    %v1055 = vpack.c.b16 %v819, %v815
    %v1056 = vpack.c.b16 %v820, %v816
    %v1057 = vpack.c.b16 %v821, %v817
    %v1058 = vpack.c.b16 %v826, %v822
    %v1059 = vpack.c.b16 %v827, %v823
    %v1060 = vpack.c.b16 %v828, %v824
    %v1061 = vpack.c.b16 %v829, %v825
    %v1062 = vpack.c.b16 %v834, %v830
    %v1063 = vpack.c.b16 %v835, %v831
    %v1064 = vpack.c.b16 %v836, %v832
    %v1065 = vpack.c.b16 %v837, %v833
    %v1066 = vpack.c.b16 %v842, %v838
    %v1067 = vpack.c.b16 %v843, %v839
    %v1068 = vpack.c.b16 %v844, %v840
    %v1069 = vpack.c.b16 %v845, %v841
    %v1070 = vpack.c.b16 %v850, %v846
    %v1071 = vpack.c.b16 %v851, %v847
    %v1072 = vpack.c.b16 %v852, %v848
    %v1073 = vpack.c.b16 %v853, %v849
    %v1074 = vpack.c.b16 %v858, %v854
    %v1075 = vpack.c.b16 %v859, %v855
    %v1076 = vpack.c.b16 %v860, %v856
    %v1077 = vpack.c.b16 %v861, %v857
    %v1078 = vpack.c.b16 %v866, %v862
    %v1079 = vpack.c.b16 %v867, %v863
    %v1080 = vpack.c.b16 %v868, %v864
    %v1081 = vpack.c.b16 %v869, %v865
    %v1082 = vpack.c.b16 %v874, %v870
    %v1083 = vpack.c.b16 %v875, %v871
    %v1084 = vpack.c.b16 %v876, %v872
    %v1085 = vpack.c.b16 %v877, %v873
    %v1086 = vpack.c.b16 %v882, %v878
    %v1087 = vpack.c.b16 %v883, %v879
    %v1088 = vpack.c.b16 %v884, %v880
    %v1089 = vpack.c.b16 %v885, %v881
    %v1090 = vpack.c.b16 %v890, %v886
    %v1091 = vpack.c.b16 %v891, %v887
    %v1092 = vpack.c.b16 %v892, %v888
    %v1093 = vpack.c.b16 %v893, %v889
    %v1094 = vpack.c.b16 %v898, %v894
    %v1095 = vpack.c.b16 %v899, %v895
    %v1096 = vpack.c.b16 %v900, %v896
    %v1097 = vpack.c.b16 %v901, %v897
    %vm1294 = vcmask 130048
    %v1296 = vsel %vm1294, %v107, 0
    %1298 = vmatpush.bf16.msra.mxu0 %v930
    %1299 = vmatpush.bf16.msra.mxu0 %v926
    %1300 = vmatpush.bf16.msra.mxu0 %v922
    %1301 = vmatpush.bf16.msra.mxu0 %v918
    %1302 = vmatpush.bf16.msra.mxu0 %v914
    %1303 = vmatpush.bf16.msra.mxu0 %v910
    %1304 = vmatpush.bf16.msra.mxu0 %v906
    %1305 = vmatpush.bf16.msra.mxu0 %v902
    %1306 = vmatmul.bf16.gmra.mxu0 %v101
    %v1307 = vpop.f32.mrf.mxu0
    %v1308 = vadd.f32 %v306, %v1307
    %v1309 = vpop.f32.mrf.mxu0
    %1310 = vdwg.mxu0
    %1311 = vmatpush.bf16.msra.mxu0 %v962
    %1312 = vmatpush.bf16.msra.mxu0 %v958
    %1313 = vmatpush.bf16.msra.mxu0 %v954
    %1314 = vmatpush.bf16.msra.mxu0 %v950
    %1315 = vmatpush.bf16.msra.mxu0 %v946
    %1316 = vmatpush.bf16.msra.mxu0 %v942
    %1317 = vmatpush.bf16.msra.mxu0 %v938
    %1318 = vmatpush.bf16.msra.mxu0 %v934
    %1319 = vmatmul.bf16.gmra.mxu0 %v102
    %v1320 = vpop.f32.mrf.mxu0
    %v1321 = vadd.f32 %v1308, %v1320
    %v1322 = vpop.f32.mrf.mxu0
    %1323 = vdwg.mxu0
    %1324 = vmatpush.bf16.msra.mxu0 %v994
    %1325 = vmatpush.bf16.msra.mxu0 %v990
    %1326 = vmatpush.bf16.msra.mxu0 %v986
    %1327 = vmatpush.bf16.msra.mxu0 %v982
    %1328 = vmatpush.bf16.msra.mxu0 %v978
    %1329 = vmatpush.bf16.msra.mxu0 %v974
    %1330 = vmatpush.bf16.msra.mxu0 %v970
    %1331 = vmatpush.bf16.msra.mxu0 %v966
    %1332 = vmatmul.bf16.gmra.mxu0 %v103
    %v1333 = vpop.f32.mrf.mxu0
    %v1334 = vadd.f32 %v1321, %v1333
    %v1335 = vpop.f32.mrf.mxu0
    %1336 = vdwg.mxu0
    %1337 = vmatpush.bf16.msra.mxu0 %v1026
    %1338 = vmatpush.bf16.msra.mxu0 %v1022
    %1339 = vmatpush.bf16.msra.mxu0 %v1018
    %1340 = vmatpush.bf16.msra.mxu0 %v1014
    %1341 = vmatpush.bf16.msra.mxu0 %v1010
    %1342 = vmatpush.bf16.msra.mxu0 %v1006
    %1343 = vmatpush.bf16.msra.mxu0 %v1002
    %1344 = vmatpush.bf16.msra.mxu0 %v998
    %1345 = vmatmul.bf16.gmra.mxu0 %v104
    %v1346 = vpop.f32.mrf.mxu0
    %v1347 = vadd.f32 %v1334, %v1346
    %v1348 = vpop.f32.mrf.mxu0
    %1349 = vdwg.mxu0
    %1350 = vmatpush.bf16.msra.mxu0 %v1058
    %1351 = vmatpush.bf16.msra.mxu0 %v1054
    %1352 = vmatpush.bf16.msra.mxu0 %v1050
    %1353 = vmatpush.bf16.msra.mxu0 %v1046
    %1354 = vmatpush.bf16.msra.mxu0 %v1042
    %1355 = vmatpush.bf16.msra.mxu0 %v1038
    %1356 = vmatpush.bf16.msra.mxu0 %v1034
    %1357 = vmatpush.bf16.msra.mxu0 %v1030
    %1358 = vmatmul.bf16.gmra.mxu0 %v105
    %v1359 = vpop.f32.mrf.mxu0
    %v1360 = vadd.f32 %v1347, %v1359
    %v1361 = vpop.f32.mrf.mxu0
    %1362 = vdwg.mxu0
    %1363 = vmatpush.bf16.msra.mxu0 %v1090
    %1364 = vmatpush.bf16.msra.mxu0 %v1086
    %1365 = vmatpush.bf16.msra.mxu0 %v1082
    %1366 = vmatpush.bf16.msra.mxu0 %v1078
    %1367 = vmatpush.bf16.msra.mxu0 %v1074
    %1368 = vmatpush.bf16.msra.mxu0 %v1070
    %1369 = vmatpush.bf16.msra.mxu0 %v1066
    %1370 = vmatpush.bf16.msra.mxu0 %v1062
    %1371 = vmatmul.bf16.gmra.mxu0 %v106
    %v1372 = vpop.f32.mrf.mxu0
    %v1373 = vadd.f32 %v1360, %v1372
    %v1374 = vpop.f32.mrf.mxu0
    %1375 = vdwg.mxu0
    %1376 = vmatpush.bf16.msra.mxu0 0
    %1377 = vmatpush.bf16.msra.mxu0 0
    %1378 = vmatpush.bf16.msra.mxu0 0
    %1379 = vmatpush.bf16.msra.mxu0 0
    %1380 = vmatpush.bf16.msra.mxu0 0
    %1381 = vmatpush.bf16.msra.mxu0 0
    %1382 = vmatpush.bf16.msra.mxu0 0
    %1383 = vmatpush.bf16.msra.mxu0 %v1094
    %1384 = vmatmul.bf16.gmra.mxu0 %v1296
    %v1385 = vpop.f32.mrf.mxu0
    %v1386 = vadd.f32 %v1373, %v1385
    %v1387 = vpop.f32.mrf.mxu0
    %1388 = vdwg.mxu0
    %1389 = vmatpush.bf16.msra.mxu0 %v931
    %1390 = vmatpush.bf16.msra.mxu0 %v927
    %1391 = vmatpush.bf16.msra.mxu0 %v923
    %1392 = vmatpush.bf16.msra.mxu0 %v919
    %1393 = vmatpush.bf16.msra.mxu0 %v915
    %1394 = vmatpush.bf16.msra.mxu0 %v911
    %1395 = vmatpush.bf16.msra.mxu0 %v907
    %1396 = vmatpush.bf16.msra.mxu0 %v903
    %1397 = vmatmul.bf16.gmra.mxu0 %v101
    %v1398 = vpop.f32.mrf.mxu0
    %v1399 = vadd.f32 %v307, %v1398
    %v1400 = vpop.f32.mrf.mxu0
    %1401 = vdwg.mxu0
    %1402 = vmatpush.bf16.msra.mxu0 %v963
    %1403 = vmatpush.bf16.msra.mxu0 %v959
    %1404 = vmatpush.bf16.msra.mxu0 %v955
    %1405 = vmatpush.bf16.msra.mxu0 %v951
    %1406 = vmatpush.bf16.msra.mxu0 %v947
    %1407 = vmatpush.bf16.msra.mxu0 %v943
    %1408 = vmatpush.bf16.msra.mxu0 %v939
    %1409 = vmatpush.bf16.msra.mxu0 %v935
    %1410 = vmatmul.bf16.gmra.mxu0 %v102
    %v1411 = vpop.f32.mrf.mxu0
    %v1412 = vadd.f32 %v1399, %v1411
    %v1413 = vpop.f32.mrf.mxu0
    %1414 = vdwg.mxu0
    %1415 = vmatpush.bf16.msra.mxu0 %v995
    %1416 = vmatpush.bf16.msra.mxu0 %v991
    %1417 = vmatpush.bf16.msra.mxu0 %v987
    %1418 = vmatpush.bf16.msra.mxu0 %v983
    %1419 = vmatpush.bf16.msra.mxu0 %v979
    %1420 = vmatpush.bf16.msra.mxu0 %v975
    %1421 = vmatpush.bf16.msra.mxu0 %v971
    %1422 = vmatpush.bf16.msra.mxu0 %v967
    %1423 = vmatmul.bf16.gmra.mxu0 %v103
    %v1424 = vpop.f32.mrf.mxu0
    %v1425 = vadd.f32 %v1412, %v1424
    %v1426 = vpop.f32.mrf.mxu0
    %1427 = vdwg.mxu0
    %1428 = vmatpush.bf16.msra.mxu0 %v1027
    %1429 = vmatpush.bf16.msra.mxu0 %v1023
    %1430 = vmatpush.bf16.msra.mxu0 %v1019
    %1431 = vmatpush.bf16.msra.mxu0 %v1015
    %1432 = vmatpush.bf16.msra.mxu0 %v1011
    %1433 = vmatpush.bf16.msra.mxu0 %v1007
    %1434 = vmatpush.bf16.msra.mxu0 %v1003
    %1435 = vmatpush.bf16.msra.mxu0 %v999
    %1436 = vmatmul.bf16.gmra.mxu0 %v104
    %v1437 = vpop.f32.mrf.mxu0
    %v1438 = vadd.f32 %v1425, %v1437
    %v1439 = vpop.f32.mrf.mxu0
    %1440 = vdwg.mxu0
    %1441 = vmatpush.bf16.msra.mxu0 %v1059
    %1442 = vmatpush.bf16.msra.mxu0 %v1055
    %1443 = vmatpush.bf16.msra.mxu0 %v1051
    %1444 = vmatpush.bf16.msra.mxu0 %v1047
    %1445 = vmatpush.bf16.msra.mxu0 %v1043
    %1446 = vmatpush.bf16.msra.mxu0 %v1039
    %1447 = vmatpush.bf16.msra.mxu0 %v1035
    %1448 = vmatpush.bf16.msra.mxu0 %v1031
    %1449 = vmatmul.bf16.gmra.mxu0 %v105
    %v1450 = vpop.f32.mrf.mxu0
    %v1451 = vadd.f32 %v1438, %v1450
    %v1452 = vpop.f32.mrf.mxu0
    %1453 = vdwg.mxu0
    %1454 = vmatpush.bf16.msra.mxu0 %v1091
    %1455 = vmatpush.bf16.msra.mxu0 %v1087
    %1456 = vmatpush.bf16.msra.mxu0 %v1083
    %1457 = vmatpush.bf16.msra.mxu0 %v1079
    %1458 = vmatpush.bf16.msra.mxu0 %v1075
    %1459 = vmatpush.bf16.msra.mxu0 %v1071
    %1460 = vmatpush.bf16.msra.mxu0 %v1067
    %1461 = vmatpush.bf16.msra.mxu0 %v1063
    %1462 = vmatmul.bf16.gmra.mxu0 %v106
    %v1463 = vpop.f32.mrf.mxu0
    %v1464 = vadd.f32 %v1451, %v1463
    %v1465 = vpop.f32.mrf.mxu0
    %1466 = vdwg.mxu0
    %1467 = vmatpush.bf16.msra.mxu0 0
    %1468 = vmatpush.bf16.msra.mxu0 0
    %1469 = vmatpush.bf16.msra.mxu0 0
    %1470 = vmatpush.bf16.msra.mxu0 0
    %1471 = vmatpush.bf16.msra.mxu0 0
    %1472 = vmatpush.bf16.msra.mxu0 0
    %1473 = vmatpush.bf16.msra.mxu0 0
    %1474 = vmatpush.bf16.msra.mxu0 %v1095
    %1475 = vmatmul.bf16.gmra.mxu0 %v1296
    %v1476 = vpop.f32.mrf.mxu0
    %v1477 = vadd.f32 %v1464, %v1476
    %v1478 = vpop.f32.mrf.mxu0
    %1479 = vdwg.mxu0
    %1480 = vmatpush.bf16.msra.mxu0 %v932
    %1481 = vmatpush.bf16.msra.mxu0 %v928
    %1482 = vmatpush.bf16.msra.mxu0 %v924
    %1483 = vmatpush.bf16.msra.mxu0 %v920
    %1484 = vmatpush.bf16.msra.mxu0 %v916
    %1485 = vmatpush.bf16.msra.mxu0 %v912
    %1486 = vmatpush.bf16.msra.mxu0 %v908
    %1487 = vmatpush.bf16.msra.mxu0 %v904
    %1488 = vmatmul.bf16.gmra.mxu0 %v101
    %v1489 = vpop.f32.mrf.mxu0
    %v1490 = vadd.f32 %v308, %v1489
    %v1491 = vpop.f32.mrf.mxu0
    %1492 = vdwg.mxu0
    %1493 = vmatpush.bf16.msra.mxu0 %v964
    %1494 = vmatpush.bf16.msra.mxu0 %v960
    %1495 = vmatpush.bf16.msra.mxu0 %v956
    %1496 = vmatpush.bf16.msra.mxu0 %v952
    %1497 = vmatpush.bf16.msra.mxu0 %v948
    %1498 = vmatpush.bf16.msra.mxu0 %v944
    %1499 = vmatpush.bf16.msra.mxu0 %v940
    %1500 = vmatpush.bf16.msra.mxu0 %v936
    %1501 = vmatmul.bf16.gmra.mxu0 %v102
    %v1502 = vpop.f32.mrf.mxu0
    %v1503 = vadd.f32 %v1490, %v1502
    %v1504 = vpop.f32.mrf.mxu0
    %1505 = vdwg.mxu0
    %1506 = vmatpush.bf16.msra.mxu0 %v996
    %1507 = vmatpush.bf16.msra.mxu0 %v992
    %1508 = vmatpush.bf16.msra.mxu0 %v988
    %1509 = vmatpush.bf16.msra.mxu0 %v984
    %1510 = vmatpush.bf16.msra.mxu0 %v980
    %1511 = vmatpush.bf16.msra.mxu0 %v976
    %1512 = vmatpush.bf16.msra.mxu0 %v972
    %1513 = vmatpush.bf16.msra.mxu0 %v968
    %1514 = vmatmul.bf16.gmra.mxu0 %v103
    %v1515 = vpop.f32.mrf.mxu0
    %v1516 = vadd.f32 %v1503, %v1515
    %v1517 = vpop.f32.mrf.mxu0
    %1518 = vdwg.mxu0
    %1519 = vmatpush.bf16.msra.mxu0 %v1028
    %1520 = vmatpush.bf16.msra.mxu0 %v1024
    %1521 = vmatpush.bf16.msra.mxu0 %v1020
    %1522 = vmatpush.bf16.msra.mxu0 %v1016
    %1523 = vmatpush.bf16.msra.mxu0 %v1012
    %1524 = vmatpush.bf16.msra.mxu0 %v1008
    %1525 = vmatpush.bf16.msra.mxu0 %v1004
    %1526 = vmatpush.bf16.msra.mxu0 %v1000
    %1527 = vmatmul.bf16.gmra.mxu0 %v104
    %v1528 = vpop.f32.mrf.mxu0
    %v1529 = vadd.f32 %v1516, %v1528
    %v1530 = vpop.f32.mrf.mxu0
    %1531 = vdwg.mxu0
    %1532 = vmatpush.bf16.msra.mxu0 %v1060
    %1533 = vmatpush.bf16.msra.mxu0 %v1056
    %1534 = vmatpush.bf16.msra.mxu0 %v1052
    %1535 = vmatpush.bf16.msra.mxu0 %v1048
    %1536 = vmatpush.bf16.msra.mxu0 %v1044
    %1537 = vmatpush.bf16.msra.mxu0 %v1040
    %1538 = vmatpush.bf16.msra.mxu0 %v1036
    %1539 = vmatpush.bf16.msra.mxu0 %v1032
    %1540 = vmatmul.bf16.gmra.mxu0 %v105
    %v1541 = vpop.f32.mrf.mxu0
    %v1542 = vadd.f32 %v1529, %v1541
    %v1543 = vpop.f32.mrf.mxu0
    %1544 = vdwg.mxu0
    %1545 = vmatpush.bf16.msra.mxu0 %v1092
    %1546 = vmatpush.bf16.msra.mxu0 %v1088
    %1547 = vmatpush.bf16.msra.mxu0 %v1084
    %1548 = vmatpush.bf16.msra.mxu0 %v1080
    %1549 = vmatpush.bf16.msra.mxu0 %v1076
    %1550 = vmatpush.bf16.msra.mxu0 %v1072
    %1551 = vmatpush.bf16.msra.mxu0 %v1068
    %1552 = vmatpush.bf16.msra.mxu0 %v1064
    %1553 = vmatmul.bf16.gmra.mxu0 %v106
    %v1554 = vpop.f32.mrf.mxu0
    %v1555 = vadd.f32 %v1542, %v1554
    %v1556 = vpop.f32.mrf.mxu0
    %1557 = vdwg.mxu0
    %1558 = vmatpush.bf16.msra.mxu0 0
    %1559 = vmatpush.bf16.msra.mxu0 0
    %1560 = vmatpush.bf16.msra.mxu0 0
    %1561 = vmatpush.bf16.msra.mxu0 0
    %1562 = vmatpush.bf16.msra.mxu0 0
    %1563 = vmatpush.bf16.msra.mxu0 0
    %1564 = vmatpush.bf16.msra.mxu0 0
    %1565 = vmatpush.bf16.msra.mxu0 %v1096
    %1566 = vmatmul.bf16.gmra.mxu0 %v1296
    %v1567 = vpop.f32.mrf.mxu0
    %v1568 = vadd.f32 %v1555, %v1567
    %v1569 = vpop.f32.mrf.mxu0
    %1570 = vdwg.mxu0
    %1571 = vmatpush.bf16.msra.mxu0 %v933
    %1572 = vmatpush.bf16.msra.mxu0 %v929
    %1573 = vmatpush.bf16.msra.mxu0 %v925
    %1574 = vmatpush.bf16.msra.mxu0 %v921
    %1575 = vmatpush.bf16.msra.mxu0 %v917
    %1576 = vmatpush.bf16.msra.mxu0 %v913
    %1577 = vmatpush.bf16.msra.mxu0 %v909
    %1578 = vmatpush.bf16.msra.mxu0 %v905
    %1579 = vmatmul.bf16.gmra.mxu0 %v101
    %v1580 = vpop.f32.mrf.mxu0
    %v1581 = vadd.f32 %v309, %v1580
    %v1582 = vpop.f32.mrf.mxu0
    %1583 = vdwg.mxu0
    %1584 = vmatpush.bf16.msra.mxu0 %v965
    %1585 = vmatpush.bf16.msra.mxu0 %v961
    %1586 = vmatpush.bf16.msra.mxu0 %v957
    %1587 = vmatpush.bf16.msra.mxu0 %v953
    %1588 = vmatpush.bf16.msra.mxu0 %v949
    %1589 = vmatpush.bf16.msra.mxu0 %v945
    %1590 = vmatpush.bf16.msra.mxu0 %v941
    %1591 = vmatpush.bf16.msra.mxu0 %v937
    %1592 = vmatmul.bf16.gmra.mxu0 %v102
    %v1593 = vpop.f32.mrf.mxu0
    %v1594 = vadd.f32 %v1581, %v1593
    %v1595 = vpop.f32.mrf.mxu0
    %1596 = vdwg.mxu0
    %1597 = vmatpush.bf16.msra.mxu0 %v997
    %1598 = vmatpush.bf16.msra.mxu0 %v993
    %1599 = vmatpush.bf16.msra.mxu0 %v989
    %1600 = vmatpush.bf16.msra.mxu0 %v985
    %1601 = vmatpush.bf16.msra.mxu0 %v981
    %1602 = vmatpush.bf16.msra.mxu0 %v977
    %1603 = vmatpush.bf16.msra.mxu0 %v973
    %1604 = vmatpush.bf16.msra.mxu0 %v969
    %1605 = vmatmul.bf16.gmra.mxu0 %v103
    %v1606 = vpop.f32.mrf.mxu0
    %v1607 = vadd.f32 %v1594, %v1606
    %v1608 = vpop.f32.mrf.mxu0
    %1609 = vdwg.mxu0
    %1610 = vmatpush.bf16.msra.mxu0 %v1029
    %1611 = vmatpush.bf16.msra.mxu0 %v1025
    %1612 = vmatpush.bf16.msra.mxu0 %v1021
    %1613 = vmatpush.bf16.msra.mxu0 %v1017
    %1614 = vmatpush.bf16.msra.mxu0 %v1013
    %1615 = vmatpush.bf16.msra.mxu0 %v1009
    %1616 = vmatpush.bf16.msra.mxu0 %v1005
    %1617 = vmatpush.bf16.msra.mxu0 %v1001
    %1618 = vmatmul.bf16.gmra.mxu0 %v104
    %v1619 = vpop.f32.mrf.mxu0
    %v1620 = vadd.f32 %v1607, %v1619
    %v1621 = vpop.f32.mrf.mxu0
    %1622 = vdwg.mxu0
    %1623 = vmatpush.bf16.msra.mxu0 %v1061
    %1624 = vmatpush.bf16.msra.mxu0 %v1057
    %1625 = vmatpush.bf16.msra.mxu0 %v1053
    %1626 = vmatpush.bf16.msra.mxu0 %v1049
    %1627 = vmatpush.bf16.msra.mxu0 %v1045
    %1628 = vmatpush.bf16.msra.mxu0 %v1041
    %1629 = vmatpush.bf16.msra.mxu0 %v1037
    %1630 = vmatpush.bf16.msra.mxu0 %v1033
    %1631 = vmatmul.bf16.gmra.mxu0 %v105
    %v1632 = vpop.f32.mrf.mxu0
    %v1633 = vadd.f32 %v1620, %v1632
    %v1634 = vpop.f32.mrf.mxu0
    %1635 = vdwg.mxu0
    %1636 = vmatpush.bf16.msra.mxu0 %v1093
    %1637 = vmatpush.bf16.msra.mxu0 %v1089
    %1638 = vmatpush.bf16.msra.mxu0 %v1085
    %1639 = vmatpush.bf16.msra.mxu0 %v1081
    %1640 = vmatpush.bf16.msra.mxu0 %v1077
    %1641 = vmatpush.bf16.msra.mxu0 %v1073
    %1642 = vmatpush.bf16.msra.mxu0 %v1069
    %1643 = vmatpush.bf16.msra.mxu0 %v1065
    %1644 = vmatmul.bf16.gmra.mxu0 %v106
    %v1645 = vpop.f32.mrf.mxu0
    %v1646 = vadd.f32 %v1633, %v1645
    %v1647 = vpop.f32.mrf.mxu0
    %1648 = vdwg.mxu0
    %1649 = vmatpush.bf16.msra.mxu0 0
    %1650 = vmatpush.bf16.msra.mxu0 0
    %1651 = vmatpush.bf16.msra.mxu0 0
    %1652 = vmatpush.bf16.msra.mxu0 0
    %1653 = vmatpush.bf16.msra.mxu0 0
    %1654 = vmatpush.bf16.msra.mxu0 0
    %1655 = vmatpush.bf16.msra.mxu0 0
    %1656 = vmatpush.bf16.msra.mxu0 %v1097
    %1657 = vmatmul.bf16.gmra.mxu0 %v1296
    %v1658 = vpop.f32.mrf.mxu0
    %v1659 = vadd.f32 %v1646, %v1658
    %v1660 = vpop.f32.mrf.mxu0
    %1661 = vdwg.mxu0
    %v1662 = vmax.f32 %v1386, 0.0
    %v1663 = vmax.f32 %v1477, 0.0
    %v1664 = vmax.f32 %v1568, 0.0
    %v1665 = vmax.f32 %v1659, 0.0
    %v1666 = vpack.c.bf16 %v1662, %v1662
    %v1667 = vpack.c.bf16 %v1663, %v1663
    %v1668 = vpack.c.bf16 %v1664, %v1664
    %v1669 = vpack.c.bf16 %v1665, %v1665
    %v1670 = vld [vmem:[#allocation8] sm:$0xff]
    %v1671 = vld [vmem:[#allocation8 + $0x8] sm:$0xff]
    %v1672 = vld [vmem:[#allocation8 + $0x10] sm:$0xff]
    %v1673 = vld [vmem:[#allocation8 + $0x18] sm:$0xff]
    %v1674 = vld [vmem:[#allocation8 + $0x20] sm:$0xff]
    %v1675 = vld [vmem:[#allocation8 + $0x28] sm:$0xff]
    %v1676 = vld [vmem:[#allocation8 + $0x30] sm:$0xff]
    %v1677 = vld [vmem:[#allocation8 + $0x38] sm:$0xff]
    %v1678 = vld [vmem:[#allocation8 + $0x40] sm:$0xff]
    %v1679 = vld [vmem:[#allocation8 + $0x48] sm:$0xff]
    %v1680 = vld [vmem:[#allocation8 + $0x50] sm:$0xff]
    %v1681 = vld [vmem:[#allocation8 + $0x58] sm:$0xff]
    %v1682 = vld [vmem:[#allocation8 + $0x60] sm:$0xff]
    %v1683 = vld [vmem:[#allocation8 + $0x68] sm:$0xff]
    %v1684 = vld [vmem:[#allocation8 + $0x70] sm:$0xff]
    %v1685 = vld [vmem:[#allocation8 + $0x78] sm:$0xff]
    %v1686 = vld [vmem:[#allocation8 + $0x80] sm:$0xff]
    %v1687 = vld [vmem:[#allocation8 + $0x88] sm:$0xff]
    %v1688 = vld [vmem:[#allocation8 + $0x90] sm:$0xff]
    %v1689 = vld [vmem:[#allocation8 + $0x98] sm:$0xff]
    %v1690 = vld [vmem:[#allocation8 + $0xa0] sm:$0xff]
    %v1691 = vld [vmem:[#allocation8 + $0xa8] sm:$0xff]
    %v1692 = vld [vmem:[#allocation8 + $0xb0] sm:$0xff]
    %v1693 = vld [vmem:[#allocation8 + $0xb8] sm:$0xff]
    %v1694 = vld [vmem:[#allocation8 + $0xc0] sm:$0xff]
    %v1695 = vld [vmem:[#allocation8 + $0xc8] sm:$0xff]
    %v1696 = vld [vmem:[#allocation8 + $0xd0] sm:$0xff]
    %v1697 = vld [vmem:[#allocation8 + $0xd8] sm:$0xff]
    %v1698 = vld [vmem:[#allocation8 + $0xe0] sm:$0xff]
    %v1699 = vld [vmem:[#allocation8 + $0xe8] sm:$0xff]
    %v1700 = vld [vmem:[#allocation8 + $0xf0] sm:$0xff]
    %v1701 = vld [vmem:[#allocation8 + $0xf8] sm:$0xff]
    %v1702 = vld [vmem:[#allocation8 + $0x100] sm:$0xff]
    %v1703 = vld [vmem:[#allocation8 + $0x108] sm:$0xff]
    %v1704 = vld [vmem:[#allocation8 + $0x110] sm:$0xff]
    %v1705 = vld [vmem:[#allocation8 + $0x118] sm:$0xff]
    %v1706 = vld [vmem:[#allocation8 + $0x120] sm:$0xff]
    %v1707 = vld [vmem:[#allocation8 + $0x128] sm:$0xff]
    %v1708 = vld [vmem:[#allocation8 + $0x130] sm:$0xff]
    %v1709 = vld [vmem:[#allocation8 + $0x138] sm:$0xff]
    %v1710 = vld [vmem:[#allocation8 + $0x140] sm:$0xff]
    %v1711 = vld [vmem:[#allocation8 + $0x148] sm:$0xff]
    %v1712 = vld [vmem:[#allocation8 + $0x150] sm:$0xff]
    %v1713 = vld [vmem:[#allocation8 + $0x158] sm:$0xff]
    %v1714 = vld [vmem:[#allocation8 + $0x160] sm:$0xff]
    %v1715 = vld [vmem:[#allocation8 + $0x168] sm:$0xff]
    %v1716 = vld [vmem:[#allocation8 + $0x170] sm:$0xff]
    %v1717 = vld [vmem:[#allocation8 + $0x178] sm:$0xff]
    %v1718 = vld [vmem:[#allocation8 + $0x180] sm:$0xff]
    %v1719 = vld [vmem:[#allocation8 + $0x188] sm:$0xff]
    %v1720 = vld [vmem:[#allocation8 + $0x190] sm:$0xff]
    %v1721 = vld [vmem:[#allocation8 + $0x198] sm:$0xff]
    %v1722 = vld [vmem:[#allocation8 + $0x1a0] sm:$0xff]
    %v1723 = vld [vmem:[#allocation8 + $0x1a8] sm:$0xff]
    %v1724 = vld [vmem:[#allocation8 + $0x1b0] sm:$0xff]
    %v1725 = vld [vmem:[#allocation8 + $0x1b8] sm:$0xff]
    %v1726 = vld [vmem:[#allocation8 + $0x1c0] sm:$0xff]
    %v1727 = vld [vmem:[#allocation8 + $0x1c8] sm:$0xff]
    %v1728 = vld [vmem:[#allocation8 + $0x1d0] sm:$0xff]
    %v1729 = vld [vmem:[#allocation8 + $0x1d8] sm:$0xff]
    %v1730 = vld [vmem:[#allocation8 + $0x1e0] sm:$0xff]
    %v1731 = vld [vmem:[#allocation8 + $0x1e8] sm:$0xff]
    %v1732 = vld [vmem:[#allocation8 + $0x1f0] sm:$0xff]
    %v1733 = vld [vmem:[#allocation8 + $0x1f8] sm:$0xff]
    %v1734 = vld [vmem:[#allocation8 + $0x200] sm:$0xff]
    %v1735 = vld [vmem:[#allocation8 + $0x208] sm:$0xff]
    %v1736 = vld [vmem:[#allocation8 + $0x210] sm:$0xff]
    %v1737 = vld [vmem:[#allocation8 + $0x218] sm:$0xff]
    %v1738 = vld [vmem:[#allocation8 + $0x220] sm:$0xff]
    %v1739 = vld [vmem:[#allocation8 + $0x228] sm:$0xff]
    %v1740 = vld [vmem:[#allocation8 + $0x230] sm:$0xff]
    %v1741 = vld [vmem:[#allocation8 + $0x238] sm:$0xff]
    %v1742 = vld [vmem:[#allocation8 + $0x240] sm:$0xff]
    %v1743 = vld [vmem:[#allocation8 + $0x248] sm:$0xff]
    %v1744 = vld [vmem:[#allocation8 + $0x250] sm:$0xff]
    %v1745 = vld [vmem:[#allocation8 + $0x258] sm:$0xff]
    %v1746 = vld [vmem:[#allocation8 + $0x260] sm:$0xff]
    %v1747 = vld [vmem:[#allocation8 + $0x268] sm:$0xff]
    %v1748 = vld [vmem:[#allocation8 + $0x270] sm:$0xff]
    %v1749 = vld [vmem:[#allocation8 + $0x278] sm:$0xff]
    %v1750 = vld [vmem:[#allocation8 + $0x280] sm:$0xff]
    %v1751 = vld [vmem:[#allocation8 + $0x288] sm:$0xff]
    %v1752 = vld [vmem:[#allocation8 + $0x290] sm:$0xff]
    %v1753 = vld [vmem:[#allocation8 + $0x298] sm:$0xff]
    %v1754 = vld [vmem:[#allocation8 + $0x2a0] sm:$0xff]
    %v1755 = vld [vmem:[#allocation8 + $0x2a8] sm:$0xff]
    %v1756 = vld [vmem:[#allocation8 + $0x2b0] sm:$0xff]
    %v1757 = vld [vmem:[#allocation8 + $0x2b8] sm:$0xff]
    %v1758 = vld [vmem:[#allocation8 + $0x2c0] sm:$0xff]
    %v1759 = vld [vmem:[#allocation8 + $0x2c8] sm:$0xff]
    %v1760 = vld [vmem:[#allocation8 + $0x2d0] sm:$0xff]
    %v1761 = vld [vmem:[#allocation8 + $0x2d8] sm:$0xff]
    %v1762 = vld [vmem:[#allocation8 + $0x2e0] sm:$0xff]
    %v1763 = vld [vmem:[#allocation8 + $0x2e8] sm:$0xff]
    %v1764 = vld [vmem:[#allocation8 + $0x2f0] sm:$0xff]
    %v1765 = vld [vmem:[#allocation8 + $0x2f8] sm:$0xff]
    %v1766 = vld [vmem:[#allocation8 + $0x300] sm:$0xff]
    %v1767 = vld [vmem:[#allocation8 + $0x308] sm:$0xff]
    %v1768 = vld [vmem:[#allocation8 + $0x310] sm:$0xff]
    %v1769 = vld [vmem:[#allocation8 + $0x318] sm:$0xff]
    %v1770 = vld [vmem:[#allocation8 + $0x320] sm:$0xff]
    %v1771 = vld [vmem:[#allocation8 + $0x328] sm:$0xff]
    %v1772 = vld [vmem:[#allocation8 + $0x330] sm:$0xff]
    %v1773 = vld [vmem:[#allocation8 + $0x338] sm:$0xff]
    %v1774 = vld [vmem:[#allocation8 + $0x340] sm:$0xff]
    %v1775 = vld [vmem:[#allocation8 + $0x348] sm:$0xff]
    %v1776 = vld [vmem:[#allocation8 + $0x350] sm:$0xff]
    %v1777 = vld [vmem:[#allocation8 + $0x358] sm:$0xff]
    %v1778 = vld [vmem:[#allocation8 + $0x360] sm:$0xff]
    %v1779 = vld [vmem:[#allocation8 + $0x368] sm:$0xff]
    %v1780 = vld [vmem:[#allocation8 + $0x370] sm:$0xff]
    %v1781 = vld [vmem:[#allocation8 + $0x378] sm:$0xff]
    %v1782 = vld [vmem:[#allocation8 + $0x380] sm:$0xff]
    %v1783 = vld [vmem:[#allocation8 + $0x388] sm:$0xff]
    %v1784 = vld [vmem:[#allocation8 + $0x390] sm:$0xff]
    %v1785 = vld [vmem:[#allocation8 + $0x398] sm:$0xff]
    %v1786 = vld [vmem:[#allocation8 + $0x3a0] sm:$0xff]
    %v1787 = vld [vmem:[#allocation8 + $0x3a8] sm:$0xff]
    %v1788 = vld [vmem:[#allocation8 + $0x3b0] sm:$0xff]
    %v1789 = vld [vmem:[#allocation8 + $0x3b8] sm:$0xff]
    %v1790 = vld [vmem:[#allocation8 + $0x3c0] sm:$0xff]
    %v1791 = vld [vmem:[#allocation8 + $0x3c8] sm:$0xff]
    %v1792 = vld [vmem:[#allocation8 + $0x3d0] sm:$0xff]
    %v1793 = vld [vmem:[#allocation8 + $0x3d8] sm:$0xff]
    %v1794 = vld [vmem:[#allocation8 + $0x3e0] sm:$0xff]
    %v1795 = vld [vmem:[#allocation8 + $0x3e8] sm:$0xff]
    %v1796 = vld [vmem:[#allocation8 + $0x3f0] sm:$0xff]
    %v1797 = vld [vmem:[#allocation8 + $0x3f8] sm:$0xff]
    %v1798 = vld [vmem:[#allocation10] sm:$0xf]
    %v1800 = vperm.slane %v1798, 0
    %v1801 = vperm.slane %v1798, 1
    %v1802 = vperm.slane %v1798, 2
    %v1803 = vperm.slane %v1798, 3
    %v1936 = vunpack.c.l.b16 %v1670
    %v1937 = vunpack.c.h.b16 %v1670
    %v1938 = vunpack.c.l.b16 %v1671
    %v1939 = vunpack.c.h.b16 %v1671
    %v1940 = vunpack.c.l.b16 %v1672
    %v1941 = vunpack.c.h.b16 %v1672
    %v1942 = vunpack.c.l.b16 %v1673
    %v1943 = vunpack.c.h.b16 %v1673
    %v1944 = vunpack.c.l.b16 %v1674
    %v1945 = vunpack.c.h.b16 %v1674
    %v1946 = vunpack.c.l.b16 %v1675
    %v1947 = vunpack.c.h.b16 %v1675
    %v1948 = vunpack.c.l.b16 %v1676
    %v1949 = vunpack.c.h.b16 %v1676
    %v1950 = vunpack.c.l.b16 %v1677
    %v1951 = vunpack.c.h.b16 %v1677
    %v1952 = vunpack.c.l.b16 %v1678
    %v1953 = vunpack.c.h.b16 %v1678
    %v1954 = vunpack.c.l.b16 %v1679
    %v1955 = vunpack.c.h.b16 %v1679
    %v1956 = vunpack.c.l.b16 %v1680
    %v1957 = vunpack.c.h.b16 %v1680
    %v1958 = vunpack.c.l.b16 %v1681
    %v1959 = vunpack.c.h.b16 %v1681
    %v1960 = vunpack.c.l.b16 %v1682
    %v1961 = vunpack.c.h.b16 %v1682
    %v1962 = vunpack.c.l.b16 %v1683
    %v1963 = vunpack.c.h.b16 %v1683
    %v1964 = vunpack.c.l.b16 %v1684
    %v1965 = vunpack.c.h.b16 %v1684
    %v1966 = vunpack.c.l.b16 %v1685
    %v1967 = vunpack.c.h.b16 %v1685
    %v1968 = vunpack.c.l.b16 %v1686
    %v1969 = vunpack.c.h.b16 %v1686
    %v1970 = vunpack.c.l.b16 %v1687
    %v1971 = vunpack.c.h.b16 %v1687
    %v1972 = vunpack.c.l.b16 %v1688
    %v1973 = vunpack.c.h.b16 %v1688
    %v1974 = vunpack.c.l.b16 %v1689
    %v1975 = vunpack.c.h.b16 %v1689
    %v1976 = vunpack.c.l.b16 %v1690
    %v1977 = vunpack.c.h.b16 %v1690
    %v1978 = vunpack.c.l.b16 %v1691
    %v1979 = vunpack.c.h.b16 %v1691
    %v1980 = vunpack.c.l.b16 %v1692
    %v1981 = vunpack.c.h.b16 %v1692
    %v1982 = vunpack.c.l.b16 %v1693
    %v1983 = vunpack.c.h.b16 %v1693
    %v1984 = vunpack.c.l.b16 %v1694
    %v1985 = vunpack.c.h.b16 %v1694
    %v1986 = vunpack.c.l.b16 %v1695
    %v1987 = vunpack.c.h.b16 %v1695
    %v1988 = vunpack.c.l.b16 %v1696
    %v1989 = vunpack.c.h.b16 %v1696
    %v1990 = vunpack.c.l.b16 %v1697
    %v1991 = vunpack.c.h.b16 %v1697
    %v1992 = vunpack.c.l.b16 %v1698
    %v1993 = vunpack.c.h.b16 %v1698
    %v1994 = vunpack.c.l.b16 %v1699
    %v1995 = vunpack.c.h.b16 %v1699
    %v1996 = vunpack.c.l.b16 %v1700
    %v1997 = vunpack.c.h.b16 %v1700
    %v1998 = vunpack.c.l.b16 %v1701
    %v1999 = vunpack.c.h.b16 %v1701
    %v2000 = vunpack.c.l.b16 %v1702
    %v2001 = vunpack.c.h.b16 %v1702
    %v2002 = vunpack.c.l.b16 %v1703
    %v2003 = vunpack.c.h.b16 %v1703
    %v2004 = vunpack.c.l.b16 %v1704
    %v2005 = vunpack.c.h.b16 %v1704
    %v2006 = vunpack.c.l.b16 %v1705
    %v2007 = vunpack.c.h.b16 %v1705
    %v2008 = vunpack.c.l.b16 %v1706
    %v2009 = vunpack.c.h.b16 %v1706
    %v2010 = vunpack.c.l.b16 %v1707
    %v2011 = vunpack.c.h.b16 %v1707
    %v2012 = vunpack.c.l.b16 %v1708
    %v2013 = vunpack.c.h.b16 %v1708
    %v2014 = vunpack.c.l.b16 %v1709
    %v2015 = vunpack.c.h.b16 %v1709
    %v2016 = vunpack.c.l.b16 %v1710
    %v2017 = vunpack.c.h.b16 %v1710
    %v2018 = vunpack.c.l.b16 %v1711
    %v2019 = vunpack.c.h.b16 %v1711
    %v2020 = vunpack.c.l.b16 %v1712
    %v2021 = vunpack.c.h.b16 %v1712
    %v2022 = vunpack.c.l.b16 %v1713
    %v2023 = vunpack.c.h.b16 %v1713
    %v2024 = vunpack.c.l.b16 %v1714
    %v2025 = vunpack.c.h.b16 %v1714
    %v2026 = vunpack.c.l.b16 %v1715
    %v2027 = vunpack.c.h.b16 %v1715
    %v2028 = vunpack.c.l.b16 %v1716
    %v2029 = vunpack.c.h.b16 %v1716
    %v2030 = vunpack.c.l.b16 %v1717
    %v2031 = vunpack.c.h.b16 %v1717
    %v2032 = vunpack.c.l.b16 %v1718
    %v2033 = vunpack.c.h.b16 %v1718
    %v2034 = vunpack.c.l.b16 %v1719
    %v2035 = vunpack.c.h.b16 %v1719
    %v2036 = vunpack.c.l.b16 %v1720
    %v2037 = vunpack.c.h.b16 %v1720
    %v2038 = vunpack.c.l.b16 %v1721
    %v2039 = vunpack.c.h.b16 %v1721
    %v2040 = vunpack.c.l.b16 %v1722
    %v2041 = vunpack.c.h.b16 %v1722
    %v2042 = vunpack.c.l.b16 %v1723
    %v2043 = vunpack.c.h.b16 %v1723
    %v2044 = vunpack.c.l.b16 %v1724
    %v2045 = vunpack.c.h.b16 %v1724
    %v2046 = vunpack.c.l.b16 %v1725
    %v2047 = vunpack.c.h.b16 %v1725
    %v2048 = vunpack.c.l.b16 %v1726
    %v2049 = vunpack.c.h.b16 %v1726
    %v2050 = vunpack.c.l.b16 %v1727
    %v2051 = vunpack.c.h.b16 %v1727
    %v2052 = vunpack.c.l.b16 %v1728
    %v2053 = vunpack.c.h.b16 %v1728
    %v2054 = vunpack.c.l.b16 %v1729
    %v2055 = vunpack.c.h.b16 %v1729
    %v2056 = vunpack.c.l.b16 %v1730
    %v2057 = vunpack.c.h.b16 %v1730
    %v2058 = vunpack.c.l.b16 %v1731
    %v2059 = vunpack.c.h.b16 %v1731
    %v2060 = vunpack.c.l.b16 %v1732
    %v2061 = vunpack.c.h.b16 %v1732
    %v2062 = vunpack.c.l.b16 %v1733
    %v2063 = vunpack.c.h.b16 %v1733
    %v2064 = vunpack.c.l.b16 %v1734
    %v2065 = vunpack.c.h.b16 %v1734
    %v2066 = vunpack.c.l.b16 %v1735
    %v2067 = vunpack.c.h.b16 %v1735
    %v2068 = vunpack.c.l.b16 %v1736
    %v2069 = vunpack.c.h.b16 %v1736
    %v2070 = vunpack.c.l.b16 %v1737
    %v2071 = vunpack.c.h.b16 %v1737
    %v2072 = vunpack.c.l.b16 %v1738
    %v2073 = vunpack.c.h.b16 %v1738
    %v2074 = vunpack.c.l.b16 %v1739
    %v2075 = vunpack.c.h.b16 %v1739
    %v2076 = vunpack.c.l.b16 %v1740
    %v2077 = vunpack.c.h.b16 %v1740
    %v2078 = vunpack.c.l.b16 %v1741
    %v2079 = vunpack.c.h.b16 %v1741
    %v2080 = vunpack.c.l.b16 %v1742
    %v2081 = vunpack.c.h.b16 %v1742
    %v2082 = vunpack.c.l.b16 %v1743
    %v2083 = vunpack.c.h.b16 %v1743
    %v2084 = vunpack.c.l.b16 %v1744
    %v2085 = vunpack.c.h.b16 %v1744
    %v2086 = vunpack.c.l.b16 %v1745
    %v2087 = vunpack.c.h.b16 %v1745
    %v2088 = vunpack.c.l.b16 %v1746
    %v2089 = vunpack.c.h.b16 %v1746
    %v2090 = vunpack.c.l.b16 %v1747
    %v2091 = vunpack.c.h.b16 %v1747
    %v2092 = vunpack.c.l.b16 %v1748
    %v2093 = vunpack.c.h.b16 %v1748
    %v2094 = vunpack.c.l.b16 %v1749
    %v2095 = vunpack.c.h.b16 %v1749
    %v2096 = vunpack.c.l.b16 %v1750
    %v2097 = vunpack.c.h.b16 %v1750
    %v2098 = vunpack.c.l.b16 %v1751
    %v2099 = vunpack.c.h.b16 %v1751
    %v2100 = vunpack.c.l.b16 %v1752
    %v2101 = vunpack.c.h.b16 %v1752
    %v2102 = vunpack.c.l.b16 %v1753
    %v2103 = vunpack.c.h.b16 %v1753
    %v2104 = vunpack.c.l.b16 %v1754
    %v2105 = vunpack.c.h.b16 %v1754
    %v2106 = vunpack.c.l.b16 %v1755
    %v2107 = vunpack.c.h.b16 %v1755
    %v2108 = vunpack.c.l.b16 %v1756
    %v2109 = vunpack.c.h.b16 %v1756
    %v2110 = vunpack.c.l.b16 %v1757
    %v2111 = vunpack.c.h.b16 %v1757
    %v2112 = vunpack.c.l.b16 %v1758
    %v2113 = vunpack.c.h.b16 %v1758
    %v2114 = vunpack.c.l.b16 %v1759
    %v2115 = vunpack.c.h.b16 %v1759
    %v2116 = vunpack.c.l.b16 %v1760
    %v2117 = vunpack.c.h.b16 %v1760
    %v2118 = vunpack.c.l.b16 %v1761
    %v2119 = vunpack.c.h.b16 %v1761
    %v2120 = vunpack.c.l.b16 %v1762
    %v2121 = vunpack.c.h.b16 %v1762
    %v2122 = vunpack.c.l.b16 %v1763
    %v2123 = vunpack.c.h.b16 %v1763
    %v2124 = vunpack.c.l.b16 %v1764
    %v2125 = vunpack.c.h.b16 %v1764
    %v2126 = vunpack.c.l.b16 %v1765
    %v2127 = vunpack.c.h.b16 %v1765
    %v2128 = vunpack.c.l.b16 %v1766
    %v2129 = vunpack.c.h.b16 %v1766
    %v2130 = vunpack.c.l.b16 %v1767
    %v2131 = vunpack.c.h.b16 %v1767
    %v2132 = vunpack.c.l.b16 %v1768
    %v2133 = vunpack.c.h.b16 %v1768
    %v2134 = vunpack.c.l.b16 %v1769
    %v2135 = vunpack.c.h.b16 %v1769
    %v2136 = vunpack.c.l.b16 %v1770
    %v2137 = vunpack.c.h.b16 %v1770
    %v2138 = vunpack.c.l.b16 %v1771
    %v2139 = vunpack.c.h.b16 %v1771
    %v2140 = vunpack.c.l.b16 %v1772
    %v2141 = vunpack.c.h.b16 %v1772
    %v2142 = vunpack.c.l.b16 %v1773
    %v2143 = vunpack.c.h.b16 %v1773
    %v2144 = vunpack.c.l.b16 %v1774
    %v2145 = vunpack.c.h.b16 %v1774
    %v2146 = vunpack.c.l.b16 %v1775
    %v2147 = vunpack.c.h.b16 %v1775
    %v2148 = vunpack.c.l.b16 %v1776
    %v2149 = vunpack.c.h.b16 %v1776
    %v2150 = vunpack.c.l.b16 %v1777
    %v2151 = vunpack.c.h.b16 %v1777
    %v2152 = vunpack.c.l.b16 %v1778
    %v2153 = vunpack.c.h.b16 %v1778
    %v2154 = vunpack.c.l.b16 %v1779
    %v2155 = vunpack.c.h.b16 %v1779
    %v2156 = vunpack.c.l.b16 %v1780
    %v2157 = vunpack.c.h.b16 %v1780
    %v2158 = vunpack.c.l.b16 %v1781
    %v2159 = vunpack.c.h.b16 %v1781
    %v2160 = vunpack.c.l.b16 %v1782
    %v2161 = vunpack.c.h.b16 %v1782
    %v2162 = vunpack.c.l.b16 %v1783
    %v2163 = vunpack.c.h.b16 %v1783
    %v2164 = vunpack.c.l.b16 %v1784
    %v2165 = vunpack.c.h.b16 %v1784
    %v2166 = vunpack.c.l.b16 %v1785
    %v2167 = vunpack.c.h.b16 %v1785
    %v2168 = vunpack.c.l.b16 %v1786
    %v2169 = vunpack.c.h.b16 %v1786
    %v2170 = vunpack.c.l.b16 %v1787
    %v2171 = vunpack.c.h.b16 %v1787
    %v2172 = vunpack.c.l.b16 %v1788
    %v2173 = vunpack.c.h.b16 %v1788
    %v2174 = vunpack.c.l.b16 %v1789
    %v2175 = vunpack.c.h.b16 %v1789
    %v2176 = vunpack.c.l.b16 %v1790
    %v2177 = vunpack.c.h.b16 %v1790
    %v2178 = vunpack.c.l.b16 %v1791
    %v2179 = vunpack.c.h.b16 %v1791
    %v2180 = vunpack.c.l.b16 %v1792
    %v2181 = vunpack.c.h.b16 %v1792
    %v2182 = vunpack.c.l.b16 %v1793
    %v2183 = vunpack.c.h.b16 %v1793
    %v2184 = vunpack.c.l.b16 %v1794
    %v2185 = vunpack.c.h.b16 %v1794
    %v2186 = vunpack.c.l.b16 %v1795
    %v2187 = vunpack.c.h.b16 %v1795
    %v2188 = vunpack.c.l.b16 %v1796
    %v2189 = vunpack.c.h.b16 %v1796
    %v2190 = vunpack.c.l.b16 %v1797
    %v2191 = vunpack.c.h.b16 %v1797
    %v2192 = vpack.c.b16 %v1940, %v1936
    %v2193 = vpack.c.b16 %v1941, %v1937
    %v2194 = vpack.c.b16 %v1942, %v1938
    %v2195 = vpack.c.b16 %v1943, %v1939
    %v2196 = vpack.c.b16 %v1948, %v1944
    %v2197 = vpack.c.b16 %v1949, %v1945
    %v2198 = vpack.c.b16 %v1950, %v1946
    %v2199 = vpack.c.b16 %v1951, %v1947
    %v2200 = vpack.c.b16 %v1956, %v1952
    %v2201 = vpack.c.b16 %v1957, %v1953
    %v2202 = vpack.c.b16 %v1958, %v1954
    %v2203 = vpack.c.b16 %v1959, %v1955
    %v2204 = vpack.c.b16 %v1964, %v1960
    %v2205 = vpack.c.b16 %v1965, %v1961
    %v2206 = vpack.c.b16 %v1966, %v1962
    %v2207 = vpack.c.b16 %v1967, %v1963
    %v2208 = vpack.c.b16 %v1972, %v1968
    %v2209 = vpack.c.b16 %v1973, %v1969
    %v2210 = vpack.c.b16 %v1974, %v1970
    %v2211 = vpack.c.b16 %v1975, %v1971
    %v2212 = vpack.c.b16 %v1980, %v1976
    %v2213 = vpack.c.b16 %v1981, %v1977
    %v2214 = vpack.c.b16 %v1982, %v1978
    %v2215 = vpack.c.b16 %v1983, %v1979
    %v2216 = vpack.c.b16 %v1988, %v1984
    %v2217 = vpack.c.b16 %v1989, %v1985
    %v2218 = vpack.c.b16 %v1990, %v1986
    %v2219 = vpack.c.b16 %v1991, %v1987
    %v2220 = vpack.c.b16 %v1996, %v1992
    %v2221 = vpack.c.b16 %v1997, %v1993
    %v2222 = vpack.c.b16 %v1998, %v1994
    %v2223 = vpack.c.b16 %v1999, %v1995
    %v2224 = vpack.c.b16 %v2004, %v2000
    %v2225 = vpack.c.b16 %v2005, %v2001
    %v2226 = vpack.c.b16 %v2006, %v2002
    %v2227 = vpack.c.b16 %v2007, %v2003
    %v2228 = vpack.c.b16 %v2012, %v2008
    %v2229 = vpack.c.b16 %v2013, %v2009
    %v2230 = vpack.c.b16 %v2014, %v2010
    %v2231 = vpack.c.b16 %v2015, %v2011
    %v2232 = vpack.c.b16 %v2020, %v2016
    %v2233 = vpack.c.b16 %v2021, %v2017
    %v2234 = vpack.c.b16 %v2022, %v2018
    %v2235 = vpack.c.b16 %v2023, %v2019
    %v2236 = vpack.c.b16 %v2028, %v2024
    %v2237 = vpack.c.b16 %v2029, %v2025
    %v2238 = vpack.c.b16 %v2030, %v2026
    %v2239 = vpack.c.b16 %v2031, %v2027
    %v2240 = vpack.c.b16 %v2036, %v2032
    %v2241 = vpack.c.b16 %v2037, %v2033
    %v2242 = vpack.c.b16 %v2038, %v2034
    %v2243 = vpack.c.b16 %v2039, %v2035
    %v2244 = vpack.c.b16 %v2044, %v2040
    %v2245 = vpack.c.b16 %v2045, %v2041
    %v2246 = vpack.c.b16 %v2046, %v2042
    %v2247 = vpack.c.b16 %v2047, %v2043
    %v2248 = vpack.c.b16 %v2052, %v2048
    %v2249 = vpack.c.b16 %v2053, %v2049
    %v2250 = vpack.c.b16 %v2054, %v2050
    %v2251 = vpack.c.b16 %v2055, %v2051
    %v2252 = vpack.c.b16 %v2060, %v2056
    %v2253 = vpack.c.b16 %v2061, %v2057
    %v2254 = vpack.c.b16 %v2062, %v2058
    %v2255 = vpack.c.b16 %v2063, %v2059
    %v2256 = vpack.c.b16 %v2068, %v2064
    %v2257 = vpack.c.b16 %v2069, %v2065
    %v2258 = vpack.c.b16 %v2070, %v2066
    %v2259 = vpack.c.b16 %v2071, %v2067
    %v2260 = vpack.c.b16 %v2076, %v2072
    %v2261 = vpack.c.b16 %v2077, %v2073
    %v2262 = vpack.c.b16 %v2078, %v2074
    %v2263 = vpack.c.b16 %v2079, %v2075
    %v2264 = vpack.c.b16 %v2084, %v2080
    %v2265 = vpack.c.b16 %v2085, %v2081
    %v2266 = vpack.c.b16 %v2086, %v2082
    %v2267 = vpack.c.b16 %v2087, %v2083
    %v2268 = vpack.c.b16 %v2092, %v2088
    %v2269 = vpack.c.b16 %v2093, %v2089
    %v2270 = vpack.c.b16 %v2094, %v2090
    %v2271 = vpack.c.b16 %v2095, %v2091
    %v2272 = vpack.c.b16 %v2100, %v2096
    %v2273 = vpack.c.b16 %v2101, %v2097
    %v2274 = vpack.c.b16 %v2102, %v2098
    %v2275 = vpack.c.b16 %v2103, %v2099
    %v2276 = vpack.c.b16 %v2108, %v2104
    %v2277 = vpack.c.b16 %v2109, %v2105
    %v2278 = vpack.c.b16 %v2110, %v2106
    %v2279 = vpack.c.b16 %v2111, %v2107
    %v2280 = vpack.c.b16 %v2116, %v2112
    %v2281 = vpack.c.b16 %v2117, %v2113
    %v2282 = vpack.c.b16 %v2118, %v2114
    %v2283 = vpack.c.b16 %v2119, %v2115
    %v2284 = vpack.c.b16 %v2124, %v2120
    %v2285 = vpack.c.b16 %v2125, %v2121
    %v2286 = vpack.c.b16 %v2126, %v2122
    %v2287 = vpack.c.b16 %v2127, %v2123
    %v2288 = vpack.c.b16 %v2132, %v2128
    %v2289 = vpack.c.b16 %v2133, %v2129
    %v2290 = vpack.c.b16 %v2134, %v2130
    %v2291 = vpack.c.b16 %v2135, %v2131
    %v2292 = vpack.c.b16 %v2140, %v2136
    %v2293 = vpack.c.b16 %v2141, %v2137
    %v2294 = vpack.c.b16 %v2142, %v2138
    %v2295 = vpack.c.b16 %v2143, %v2139
    %v2296 = vpack.c.b16 %v2148, %v2144
    %v2297 = vpack.c.b16 %v2149, %v2145
    %v2298 = vpack.c.b16 %v2150, %v2146
    %v2299 = vpack.c.b16 %v2151, %v2147
    %v2300 = vpack.c.b16 %v2156, %v2152
    %v2301 = vpack.c.b16 %v2157, %v2153
    %v2302 = vpack.c.b16 %v2158, %v2154
    %v2303 = vpack.c.b16 %v2159, %v2155
    %v2304 = vpack.c.b16 %v2164, %v2160
    %v2305 = vpack.c.b16 %v2165, %v2161
    %v2306 = vpack.c.b16 %v2166, %v2162
    %v2307 = vpack.c.b16 %v2167, %v2163
    %v2308 = vpack.c.b16 %v2172, %v2168
    %v2309 = vpack.c.b16 %v2173, %v2169
    %v2310 = vpack.c.b16 %v2174, %v2170
    %v2311 = vpack.c.b16 %v2175, %v2171
    %v2312 = vpack.c.b16 %v2180, %v2176
    %v2313 = vpack.c.b16 %v2181, %v2177
    %v2314 = vpack.c.b16 %v2182, %v2178
    %v2315 = vpack.c.b16 %v2183, %v2179
    %v2316 = vpack.c.b16 %v2188, %v2184
    %v2317 = vpack.c.b16 %v2189, %v2185
    %v2318 = vpack.c.b16 %v2190, %v2186
    %v2319 = vpack.c.b16 %v2191, %v2187
    %2448 = vmatpush.bf16.msra.mxu0 %v2220
    %2449 = vmatpush.bf16.msra.mxu0 %v2216
    %2450 = vmatpush.bf16.msra.mxu0 %v2212
    %2451 = vmatpush.bf16.msra.mxu0 %v2208
    %2452 = vmatpush.bf16.msra.mxu0 %v2204
    %2453 = vmatpush.bf16.msra.mxu0 %v2200
    %2454 = vmatpush.bf16.msra.mxu0 %v2196
    %2455 = vmatpush.bf16.msra.mxu0 %v2192
    %2456 = vmatmul.bf16.gmra.mxu0 %v1666
    %v2457 = vpop.f32.mrf.mxu0
    %v2458 = vadd.f32 %v1800, %v2457
    %v2459 = vpop.f32.mrf.mxu0
    %2460 = vdwg.mxu0
    %2461 = vmatpush.bf16.msra.mxu0 %v2252
    %2462 = vmatpush.bf16.msra.mxu0 %v2248
    %2463 = vmatpush.bf16.msra.mxu0 %v2244
    %2464 = vmatpush.bf16.msra.mxu0 %v2240
    %2465 = vmatpush.bf16.msra.mxu0 %v2236
    %2466 = vmatpush.bf16.msra.mxu0 %v2232
    %2467 = vmatpush.bf16.msra.mxu0 %v2228
    %2468 = vmatpush.bf16.msra.mxu0 %v2224
    %2469 = vmatmul.bf16.gmra.mxu0 %v1667
    %v2470 = vpop.f32.mrf.mxu0
    %v2471 = vadd.f32 %v2458, %v2470
    %v2472 = vpop.f32.mrf.mxu0
    %2473 = vdwg.mxu0
    %2474 = vmatpush.bf16.msra.mxu0 %v2284
    %2475 = vmatpush.bf16.msra.mxu0 %v2280
    %2476 = vmatpush.bf16.msra.mxu0 %v2276
    %2477 = vmatpush.bf16.msra.mxu0 %v2272
    %2478 = vmatpush.bf16.msra.mxu0 %v2268
    %2479 = vmatpush.bf16.msra.mxu0 %v2264
    %2480 = vmatpush.bf16.msra.mxu0 %v2260
    %2481 = vmatpush.bf16.msra.mxu0 %v2256
    %2482 = vmatmul.bf16.gmra.mxu0 %v1668
    %v2483 = vpop.f32.mrf.mxu0
    %v2484 = vadd.f32 %v2471, %v2483
    %v2485 = vpop.f32.mrf.mxu0
    %2486 = vdwg.mxu0
    %2487 = vmatpush.bf16.msra.mxu0 %v2316
    %2488 = vmatpush.bf16.msra.mxu0 %v2312
    %2489 = vmatpush.bf16.msra.mxu0 %v2308
    %2490 = vmatpush.bf16.msra.mxu0 %v2304
    %2491 = vmatpush.bf16.msra.mxu0 %v2300
    %2492 = vmatpush.bf16.msra.mxu0 %v2296
    %2493 = vmatpush.bf16.msra.mxu0 %v2292
    %2494 = vmatpush.bf16.msra.mxu0 %v2288
    %2495 = vmatmul.bf16.gmra.mxu0 %v1669
    %v2496 = vpop.f32.mrf.mxu0
    %v2497 = vadd.f32 %v2484, %v2496
    %v2498 = vpop.f32.mrf.mxu0
    %2499 = vdwg.mxu0
    %2500 = vmatpush.bf16.msra.mxu0 %v2221
    %2501 = vmatpush.bf16.msra.mxu0 %v2217
    %2502 = vmatpush.bf16.msra.mxu0 %v2213
    %2503 = vmatpush.bf16.msra.mxu0 %v2209
    %2504 = vmatpush.bf16.msra.mxu0 %v2205
    %2505 = vmatpush.bf16.msra.mxu0 %v2201
    %2506 = vmatpush.bf16.msra.mxu0 %v2197
    %2507 = vmatpush.bf16.msra.mxu0 %v2193
    %2508 = vmatmul.bf16.gmra.mxu0 %v1666
    %v2509 = vpop.f32.mrf.mxu0
    %v2510 = vadd.f32 %v1801, %v2509
    %v2511 = vpop.f32.mrf.mxu0
    %2512 = vdwg.mxu0
    %2513 = vmatpush.bf16.msra.mxu0 %v2253
    %2514 = vmatpush.bf16.msra.mxu0 %v2249
    %2515 = vmatpush.bf16.msra.mxu0 %v2245
    %2516 = vmatpush.bf16.msra.mxu0 %v2241
    %2517 = vmatpush.bf16.msra.mxu0 %v2237
    %2518 = vmatpush.bf16.msra.mxu0 %v2233
    %2519 = vmatpush.bf16.msra.mxu0 %v2229
    %2520 = vmatpush.bf16.msra.mxu0 %v2225
    %2521 = vmatmul.bf16.gmra.mxu0 %v1667
    %v2522 = vpop.f32.mrf.mxu0
    %v2523 = vadd.f32 %v2510, %v2522
    %v2524 = vpop.f32.mrf.mxu0
    %2525 = vdwg.mxu0
    %2526 = vmatpush.bf16.msra.mxu0 %v2285
    %2527 = vmatpush.bf16.msra.mxu0 %v2281
    %2528 = vmatpush.bf16.msra.mxu0 %v2277
    %2529 = vmatpush.bf16.msra.mxu0 %v2273
    %2530 = vmatpush.bf16.msra.mxu0 %v2269
    %2531 = vmatpush.bf16.msra.mxu0 %v2265
    %2532 = vmatpush.bf16.msra.mxu0 %v2261
    %2533 = vmatpush.bf16.msra.mxu0 %v2257
    %2534 = vmatmul.bf16.gmra.mxu0 %v1668
    %v2535 = vpop.f32.mrf.mxu0
    %v2536 = vadd.f32 %v2523, %v2535
    %v2537 = vpop.f32.mrf.mxu0
    %2538 = vdwg.mxu0
    %2539 = vmatpush.bf16.msra.mxu0 %v2317
    %2540 = vmatpush.bf16.msra.mxu0 %v2313
    %2541 = vmatpush.bf16.msra.mxu0 %v2309
    %2542 = vmatpush.bf16.msra.mxu0 %v2305
    %2543 = vmatpush.bf16.msra.mxu0 %v2301
    %2544 = vmatpush.bf16.msra.mxu0 %v2297
    %2545 = vmatpush.bf16.msra.mxu0 %v2293
    %2546 = vmatpush.bf16.msra.mxu0 %v2289
    %2547 = vmatmul.bf16.gmra.mxu0 %v1669
    %v2548 = vpop.f32.mrf.mxu0
    %v2549 = vadd.f32 %v2536, %v2548
    %v2550 = vpop.f32.mrf.mxu0
    %2551 = vdwg.mxu0
    %2552 = vmatpush.bf16.msra.mxu0 %v2222
    %2553 = vmatpush.bf16.msra.mxu0 %v2218
    %2554 = vmatpush.bf16.msra.mxu0 %v2214
    %2555 = vmatpush.bf16.msra.mxu0 %v2210
    %2556 = vmatpush.bf16.msra.mxu0 %v2206
    %2557 = vmatpush.bf16.msra.mxu0 %v2202
    %2558 = vmatpush.bf16.msra.mxu0 %v2198
    %2559 = vmatpush.bf16.msra.mxu0 %v2194
    %2560 = vmatmul.bf16.gmra.mxu0 %v1666
    %v2561 = vpop.f32.mrf.mxu0
    %v2562 = vadd.f32 %v1802, %v2561
    %v2563 = vpop.f32.mrf.mxu0
    %2564 = vdwg.mxu0
    %2565 = vmatpush.bf16.msra.mxu0 %v2254
    %2566 = vmatpush.bf16.msra.mxu0 %v2250
    %2567 = vmatpush.bf16.msra.mxu0 %v2246
    %2568 = vmatpush.bf16.msra.mxu0 %v2242
    %2569 = vmatpush.bf16.msra.mxu0 %v2238
    %2570 = vmatpush.bf16.msra.mxu0 %v2234
    %2571 = vmatpush.bf16.msra.mxu0 %v2230
    %2572 = vmatpush.bf16.msra.mxu0 %v2226
    %2573 = vmatmul.bf16.gmra.mxu0 %v1667
    %v2574 = vpop.f32.mrf.mxu0
    %v2575 = vadd.f32 %v2562, %v2574
    %v2576 = vpop.f32.mrf.mxu0
    %2577 = vdwg.mxu0
    %2578 = vmatpush.bf16.msra.mxu0 %v2286
    %2579 = vmatpush.bf16.msra.mxu0 %v2282
    %2580 = vmatpush.bf16.msra.mxu0 %v2278
    %2581 = vmatpush.bf16.msra.mxu0 %v2274
    %2582 = vmatpush.bf16.msra.mxu0 %v2270
    %2583 = vmatpush.bf16.msra.mxu0 %v2266
    %2584 = vmatpush.bf16.msra.mxu0 %v2262
    %2585 = vmatpush.bf16.msra.mxu0 %v2258
    %2586 = vmatmul.bf16.gmra.mxu0 %v1668
    %v2587 = vpop.f32.mrf.mxu0
    %v2588 = vadd.f32 %v2575, %v2587
    %v2589 = vpop.f32.mrf.mxu0
    %2590 = vdwg.mxu0
    %2591 = vmatpush.bf16.msra.mxu0 %v2318
    %2592 = vmatpush.bf16.msra.mxu0 %v2314
    %2593 = vmatpush.bf16.msra.mxu0 %v2310
    %2594 = vmatpush.bf16.msra.mxu0 %v2306
    %2595 = vmatpush.bf16.msra.mxu0 %v2302
    %2596 = vmatpush.bf16.msra.mxu0 %v2298
    %2597 = vmatpush.bf16.msra.mxu0 %v2294
    %2598 = vmatpush.bf16.msra.mxu0 %v2290
    %2599 = vmatmul.bf16.gmra.mxu0 %v1669
    %v2600 = vpop.f32.mrf.mxu0
    %v2601 = vadd.f32 %v2588, %v2600
    %v2602 = vpop.f32.mrf.mxu0
    %2603 = vdwg.mxu0
    %2604 = vmatpush.bf16.msra.mxu0 %v2223
    %2605 = vmatpush.bf16.msra.mxu0 %v2219
    %2606 = vmatpush.bf16.msra.mxu0 %v2215
    %2607 = vmatpush.bf16.msra.mxu0 %v2211
    %2608 = vmatpush.bf16.msra.mxu0 %v2207
    %2609 = vmatpush.bf16.msra.mxu0 %v2203
    %2610 = vmatpush.bf16.msra.mxu0 %v2199
    %2611 = vmatpush.bf16.msra.mxu0 %v2195
    %2612 = vmatmul.bf16.gmra.mxu0 %v1666
    %v2613 = vpop.f32.mrf.mxu0
    %v2614 = vadd.f32 %v1803, %v2613
    %v2615 = vpop.f32.mrf.mxu0
    %2616 = vdwg.mxu0
    %2617 = vmatpush.bf16.msra.mxu0 %v2255
    %2618 = vmatpush.bf16.msra.mxu0 %v2251
    %2619 = vmatpush.bf16.msra.mxu0 %v2247
    %2620 = vmatpush.bf16.msra.mxu0 %v2243
    %2621 = vmatpush.bf16.msra.mxu0 %v2239
    %2622 = vmatpush.bf16.msra.mxu0 %v2235
    %2623 = vmatpush.bf16.msra.mxu0 %v2231
    %2624 = vmatpush.bf16.msra.mxu0 %v2227
    %2625 = vmatmul.bf16.gmra.mxu0 %v1667
    %v2626 = vpop.f32.mrf.mxu0
    %v2627 = vadd.f32 %v2614, %v2626
    %v2628 = vpop.f32.mrf.mxu0
    %2629 = vdwg.mxu0
    %2630 = vmatpush.bf16.msra.mxu0 %v2287
    %2631 = vmatpush.bf16.msra.mxu0 %v2283
    %2632 = vmatpush.bf16.msra.mxu0 %v2279
    %2633 = vmatpush.bf16.msra.mxu0 %v2275
    %2634 = vmatpush.bf16.msra.mxu0 %v2271
    %2635 = vmatpush.bf16.msra.mxu0 %v2267
    %2636 = vmatpush.bf16.msra.mxu0 %v2263
    %2637 = vmatpush.bf16.msra.mxu0 %v2259
    %2638 = vmatmul.bf16.gmra.mxu0 %v1668
    %v2639 = vpop.f32.mrf.mxu0
    %v2640 = vadd.f32 %v2627, %v2639
    %v2641 = vpop.f32.mrf.mxu0
    %2642 = vdwg.mxu0
    %2643 = vmatpush.bf16.msra.mxu0 %v2319
    %2644 = vmatpush.bf16.msra.mxu0 %v2315
    %2645 = vmatpush.bf16.msra.mxu0 %v2311
    %2646 = vmatpush.bf16.msra.mxu0 %v2307
    %2647 = vmatpush.bf16.msra.mxu0 %v2303
    %2648 = vmatpush.bf16.msra.mxu0 %v2299
    %2649 = vmatpush.bf16.msra.mxu0 %v2295
    %2650 = vmatpush.bf16.msra.mxu0 %v2291
    %2651 = vmatmul.bf16.gmra.mxu0 %v1669
    %v2652 = vpop.f32.mrf.mxu0
    %v2653 = vadd.f32 %v2640, %v2652
    %v2654 = vpop.f32.mrf.mxu0
    %2655 = vdwg.mxu0
    %2656 = vst [vmem:[#allocation11] sm:$0xff] %v2497
    %2657 = vst [vmem:[#allocation11 + $0x8] sm:$0xff] %v2549
    %2658 = vst [vmem:[#allocation11 + $0x10] sm:$0xff] %v2601
    %2659 = vst [vmem:[#allocation11 + $0x18] sm:$0xff] %v2653
    // Predicated region
    $region42: #{neural_net_forward_padded.1} parent=1 // pred_check
      _
    $region43: #{neural_net_forward_padded.1} parent=1 // pred_check_branch
      %2661 = sbr.rel (0) target = $region45
    $region44: #{neural_net_forward_padded.1} parent=1 // pred_region
      %2663 = vsyncadd [#allocation4], 0
      %s2665 = sshll.u32 [#allocation11], 4
      %s2666 = int_to_ptr.vmem [resolvable:$true] %s2665
      %s2667 = sshll.u32 %s5, 4
      %s2668 = int_to_ptr.hbm [resolvable:$true] %s2667
      %2670 = dma.vmem_to_hbm [thread:$0]  %s2666, 512, %s2668, [#allocation4]
    $region45: #{neural_net_forward_padded.1} parent=1 // pred_fallthru
      _
    // Predicated region
    $region46: #{neural_net_forward_padded.1} parent=1 // pred_check
      _
    $region47: #{neural_net_forward_padded.1} parent=1 // pred_check_branch
      %2672 = sbr.rel (0) target = $region49
    $region48: #{neural_net_forward_padded.1} parent=1 // pred_region
      %2674 = dma.done [#allocation4], 512
    $region49: #{neural_net_forward_padded.1} parent=1 // pred_fallthru
      _
    %2675 = vsyncpa [#allocation3], 1
    %2676 = vsyncpa [#allocation6], 1
    %2677 = vsyncpa [#allocation9], 1
    %2678 = vsyncpa [#allocation4], 1

</llo_original>
